<compile_context>
chip_gen: v7x
topology: tpu7x:2x2x1
jax: 0.10.0
libtpu: 0.0.40
codegen_flags: <defaults>
</compile_context>

<pallas_src>
import functools

import jax
import jax.numpy as jnp
import numpy as np
from jax.experimental import pallas as pl
from jax.experimental.pallas import tpu as pltpu


def _round_up(x, m):
    return (x + m - 1) // m * m


def _pad_to(a, shape):
    if tuple(a.shape) == tuple(shape):
        return a
    return jnp.pad(a, [(0, s - d) for d, s in zip(a.shape, shape)])


def _default_vmem_limit():
    # ~85% of physical VMEM (v5e/v6e: 128 MiB -> ~109 MiB; v7x: 64 MiB -> ~54 MiB),
    # leaving headroom for compiler scratch.
    try:
        cap = pltpu.get_tpu_info().vmem_capacity_bytes
    except Exception:
        cap = 128 * 1024 * 1024
    return min(int(cap * 0.85), 112 * 1024 * 1024)


# ----------------------------- stage 1 kernel ------------------------------
def _stage1_kernel(x_ref, *refs, t_tile, conv_pad, w_rows, t_real, c_pad,
                   fuse_glu):
    if fuse_glu:
        w1_ref, b1_ref, wd_ref, bd_ref, acc_ref, stats_ref = refs
    else:
        (w1a_ref, w1g_ref, b1a_ref, b1g_ref, wd_ref, bd_ref,
         acc_ref, stats_ref) = refs

    t = pl.program_id(1)
    start = pl.multiple_of(t * t_tile, t_tile)

    # Halo'd window (w_rows = t_tile + 2*pad rounded up to 8 rows) of this batch
    # element's padded time axis.  x is already in the matmul dtype.
    xw = x_ref[pl.ds(start, w_rows), :]                           # (W, Cp)

    if fuse_glu:
        # One (W, Cp) x (Cp, 2Cp) matmul; a/g split at column c_pad is
        # lane-tile aligned (multiple of 128) -> free slice.
        y = jnp.dot(xw, w1_ref[...], preferred_element_type=jnp.float32)
        y = y + b1_ref[...]
        a, g = y[:, :c_pad], y[:, c_pad:]
    else:
        a = jnp.dot(xw, w1a_ref[...],
                    preferred_element_type=jnp.float32) + b1a_ref[...]
        g = jnp.dot(xw, w1g_ref[...],
                    preferred_element_type=jnp.float32) + b1g_ref[...]
    glu = a * jax.nn.sigmoid(g)                                   # f32 (W, Cp)

    # Zero halo rows outside the real sequence: implements the depthwise conv's
    # 'same' zero padding (GLU of zero-padded input rows is NOT zero).
    gidx = start + jax.lax.broadcasted_iota(jnp.int32, (w_rows, 1), 0)
    glu = jnp.where((gidx >= conv_pad) & (gidx < conv_pad + t_real), glu, 0.0)

    # Depthwise conv along time: K static shift-and-accumulate taps.
    # TODO(synk): if a bundle dump shows the VALU/copy path binding (small c_pad),
    # express the per-tap sublane shifts with pltpu.roll on a VMEM scratch.
    wd = wd_ref[...]                                              # (K, Cp) f32
    k_taps = wd.shape[0]
    acc = glu[0:t_tile, :] * wd[0:1, :]
    for k in range(1, k_taps):
        acc = acc + glu[k:k + t_tile, :] * wd[k:k + 1, :]
    acc = acc + bd_ref[...]                                       # (t_tile, Cp) f32

    acc_ref[...] = acc.astype(acc_ref.dtype)

    # Fused per-channel BatchNorm partials (sum, sum of squares) over rows that
    # are real (not time-tiling padding); single (2, Cp) store.
    ridx = start + jax.lax.broadcasted_iota(jnp.int32, (t_tile, 1), 0)
    m = (ridx < t_real).astype(jnp.float32)
    accm = acc * m
    stats_ref[...] = jnp.concatenate(
        [jnp.sum(accm, axis=0, keepdims=True),
         jnp.sum(accm * acc, axis=0, keepdims=True)], axis=0)


# ----------------------------- stage 2 kernel ------------------------------
def _stage2_kernel(acc_ref, scale_ref, shift_ref, w2_ref, b2_ref, o_ref, *,
                   matmul_dtype):
    # BatchNorm folded into a per-channel affine, then ReLU, then pointwise_conv2.
    h = acc_ref[...].astype(jnp.float32) * scale_ref[...] + shift_ref[...]
    h = jnp.maximum(h, 0.0)
    if matmul_dtype is not None:
        h = h.astype(matmul_dtype)                                # w2 is pre-cast
    o_ref[...] = (jnp.dot(h, w2_ref[...], preferred_element_type=jnp.float32)
                  + b2_ref[...]).astype(o_ref.dtype)


# ------------------------------- wrapper ------------------------------------
def conv_module_pallas(x, params, *, t_tile=None, matmul_dtype=jnp.bfloat16,
                       vmem_limit_bytes=None):
    B, T, C = x.shape
    K = params["wd"].shape[0]
    conv_pad = (K - 1) // 2

    f32 = jnp.float32
    mdt = f32 if matmul_dtype is None else matmul_dtype   # MXU input dtype
    acc_dtype = f32 if matmul_dtype is None else matmul_dtype

    if vmem_limit_bytes is None:
        vmem_limit_bytes = _default_vmem_limit()

    c_pad = _round_up(max(C, 128), 128)          # lane-dense channel dim
    if t_tile is None:
        # Budget ~8 live (t_tile, Cp) f32-sized buffers against a slice of the
        # scoped VMEM limit; bigger tiles amortize the ~0.35us/step overhead.
        budget = max(8 * 1024 * 1024, vmem_limit_bytes // 6)
        budget_rows = budget // (8 * c_pad * 4)
        t_tile = max(16, min(_round_up(T, 16),
                             _round_up(min(budget_rows, 1024), 16)))
    t_tile = _round_up(t_tile, 16)               # bf16 (16,128) tile friendly

    t_full = _round_up(T, t_tile)                # T padded to whole tiles
    n_t = t_full // t_tile
    w_rows = _round_up(t_tile + 2 * conv_pad, 8)  # sublane-aligned halo window
    t_halo = t_full - t_tile + w_rows            # rows of padded per-batch block

    # Padded input copy emitted directly in the matmul dtype (half the bytes
    # for bf16); channel pad skipped if C is already a multiple of 128.
    # TODO(synk): eliminate this XLA-side padded copy entirely by masking the
    # time edges in-kernel with element-offset windows.
    x_p = jnp.pad(x.astype(mdt),
                  ((0, 0), (conv_pad, t_halo - conv_pad - T), (0, c_pad - C)))

    w1, b1 = params["w1"], params["b1"]
    w1a = _pad_to(w1[:, :C], (c_pad, c_pad))
    w1g = _pad_to(w1[:, C:], (c_pad, c_pad))
    b1a = _pad_to(b1[:, :C], (1, c_pad)).astype(f32)
    b1g = _pad_to(b1[:, C:], (1, c_pad)).astype(f32)
    wd_p = _pad_to(params["wd"], (K, c_pad)).astype(f32)
    bd_p = _pad_to(params["bd"], (1, c_pad)).astype(f32)
    gamma_p = _pad_to(params["gamma"], (1, c_pad)).astype(f32)
    beta_p = _pad_to(params["beta"], (1, c_pad)).astype(f32)
    w2_p = _pad_to(params["w2"], (c_pad, c_pad)).astype(mdt)
    b2_p = _pad_to(params["b2"], (1, c_pad)).astype(f32)

    # Fuse the GLU matmuls when the channel tile is a single 128 lane tile:
    # fills the 256-wide MXU (v6e/v7x); the column split stays lane-aligned.
    fuse_glu = (c_pad == 128)
    if fuse_glu:
        w1_in = (jnp.concatenate([w1a, w1g], axis=1).astype(mdt),   # (Cp, 2Cp)
                 jnp.concatenate([b1a, b1g], axis=1))               # (1, 2Cp) f32
    else:
        w1_in = (w1a.astype(mdt), w1g.astype(mdt), b1a, b1g)

    grid = (B, n_t)
    const = lambda b, t: (0, 0)                  # weights resident across steps
    single = pl.Buffered(1)                      # constant/resident: one buffer
    cparams = pltpu.CompilerParams(
        dimension_semantics=("parallel", "parallel"),
        vmem_limit_bytes=vmem_limit_bytes)

    mm_bytes = jnp.dtype(mdt).itemsize
    acc_bytes = jnp.dtype(acc_dtype).itemsize

    # ---- stage 1: pw1 + GLU + depthwise conv + BN partial statistics
    rows1 = B * n_t * w_rows
    cost1 = pl.CostEstimate(
        flops=int(4 * rows1 * c_pad * c_pad + 2 * K * B * t_full * c_pad),
        transcendentals=int(rows1 * c_pad),
        bytes_accessed=int(mm_bytes * (B * t_halo * c_pad + 2 * c_pad * c_pad)
                           + acc_bytes * B * t_full * c_pad
                           + 4 * ((K + 5) * c_pad + B * n_t * 2 * c_pad)))

    if fuse_glu:
        w_specs = [
            pl.BlockSpec((c_pad, 2 * c_pad), const, pipeline_mode=single),  # w1
            pl.BlockSpec((1, 2 * c_pad), const, pipeline_mode=single),      # b1
        ]
    else:
        w_specs = [
            pl.BlockSpec((c_pad, c_pad), const, pipeline_mode=single),      # w1a
            pl.BlockSpec((c_pad, c_pad), const, pipeline_mode=single),      # w1g
            pl.BlockSpec((1, c_pad), const, pipeline_mode=single),          # b1a
            pl.BlockSpec((1, c_pad), const, pipeline_mode=single),          # b1g
        ]

    acc, stats = pl.pallas_call(
        functools.partial(_stage1_kernel, t_tile=t_tile, conv_pad=conv_pad,
                          w_rows=w_rows, t_real=T, c_pad=c_pad,
                          fuse_glu=fuse_glu),
        grid_spec=pltpu.PrefetchScalarGridSpec(
            num_scalar_prefetch=0,
            grid=grid,
            in_specs=[
                # Whole padded time axis of one batch element; its block index
                # changes only with b, so a single buffer suffices (halves the
                # T-scaled x residency -> fits v7x's 64 MiB VMEM).
                pl.BlockSpec((None, t_halo, c_pad), lambda b, t: (b, 0, 0),
                             pipeline_mode=single),
            ] + w_specs + [
                pl.BlockSpec((K, c_pad), const, pipeline_mode=single),      # wd
                pl.BlockSpec((1, c_pad), const, pipeline_mode=single),      # bd
            ],
            out_specs=[
                pl.BlockSpec((None, t_tile, c_pad), lambda b, t: (b, t, 0)),
                pl.BlockSpec((None, None, 2, c_pad), lambda b, t: (b, t, 0, 0)),
            ]),
        out_shape=[
            jax.ShapeDtypeStruct((B, t_full, c_pad), acc_dtype),
            jax.ShapeDtypeStruct((B, n_t, 2, c_pad), f32),
        ],
        compiler_params=cparams,
        cost_estimate=cost1,
    )(x_p, *w1_in, wd_p, bd_p)

    # ---- BN statistics over the FULL (B, T) extent (tiny O(C) epilogue)
    sums = jnp.sum(stats, axis=(0, 1))                      # (2, Cp)
    n = float(B * T)
    mean = sums[0] / n
    var = jnp.maximum(sums[1] / n - mean * mean, 0.0)       # biased (training) var
    inv = jax.lax.rsqrt(var + 1e-5)
    scale = (gamma_p[0] * inv)[None, :]                     # (1, Cp)
    shift = (beta_p[0] - mean * gamma_p[0] * inv)[None, :]  # (1, Cp)

    # ---- stage 2: BN affine + ReLU + pointwise_conv2
    cost2 = pl.CostEstimate(
        flops=int(2 * B * t_full * c_pad * c_pad + 3 * B * t_full * c_pad),
        transcendentals=0,
        bytes_accessed=int(acc_bytes * B * t_full * c_pad
                           + mm_bytes * c_pad * c_pad
                           + 4 * (B * t_full * c_pad + 3 * c_pad)))
    out_p = pl.pallas_call(
        functools.partial(_stage2_kernel, matmul_dtype=matmul_dtype),
        grid_spec=pltpu.PrefetchScalarGridSpec(
            num_scalar_prefetch=0,
            grid=grid,
            in_specs=[
                pl.BlockSpec((None, t_tile, c_pad), lambda b, t: (b, t, 0)),
                pl.BlockSpec((1, c_pad), const, pipeline_mode=single),     # scale
                pl.BlockSpec((1, c_pad), const, pipeline_mode=single),     # shift
                pl.BlockSpec((c_pad, c_pad), const, pipeline_mode=single), # w2
                pl.BlockSpec((1, c_pad), const, pipeline_mode=single),     # b2
            ],
            out_specs=pl.BlockSpec((None, t_tile, c_pad), lambda b, t: (b, t, 0))),
        out_shape=jax.ShapeDtypeStruct((B, t_full, c_pad), f32),
        compiler_params=cparams,
        cost_estimate=cost2,
    )(acc, scale, shift, w2_p, b2_p)

    return out_p[:, :T, :C]


# ------------------------------ reference -----------------------------------
def conv_module_ref(x, params):
    """Pure-JAX reference mirroring the PyTorch forward exactly."""
    B, T, C = x.shape
    K = params["wd"].shape[0]
    pad = (K - 1) // 2
    y = x.reshape(B * T, C) @ params["w1"] + params["b1"]
    a, g = y[:, :C], y[:, C:]
    glu = (a * jax.nn.sigmoid(g)).reshape(B, T, C)
    padded = jnp.pad(glu, ((0, 0), (pad, pad), (0, 0)))
    acc = sum(padded[:, k:k + T, :] * params["wd"][k][None, None, :] for k in range(K))
    acc = acc + params["bd"][None]
    mean = jnp.mean(acc, axis=(0, 1), keepdims=True)
    var = jnp.mean((acc - mean) ** 2, axis=(0, 1), keepdims=True)
    h = (acc - mean) / jnp.sqrt(var + 1e-5) * params["gamma"][None] + params["beta"][None]
    h = jnp.maximum(h, 0.0)
    out = h.reshape(B * T, C) @ params["w2"] + params["b2"]
    return out.reshape(B, T, C)


def init_params(key, channels, kernel_size):
    ks = jax.random.split(key, 8)
    C, K = channels, kernel_size
    scale = 0.1
    return {
        # pointwise_conv1: Conv1d(C, 2C, 1) -> weight laid out as (C, 2C) for x @ w1
        "w1": scale * jax.random.normal(ks[0], (C, 2 * C), jnp.float32),
        "b1": scale * jax.random.normal(ks[1], (1, 2 * C), jnp.float32),
        # depthwise_conv: Conv1d(C, C, K, groups=C) -> weight (K, C)
        "wd": scale * jax.random.normal(ks[2], (K, C), jnp.float32),
        "bd": scale * jax.random.normal(ks[3], (1, C), jnp.float32),
        # BatchNorm1d affine params
        "gamma": 1.0 + scale * jax.random.normal(ks[4], (1, C), jnp.float32),
        "beta": scale * jax.random.normal(ks[5], (1, C), jnp.float32),
        # pointwise_conv2: Conv1d(C, C, 1) -> weight (C, C)
        "w2": scale * jax.random.normal(ks[6], (C, C), jnp.float32),
        "b2": scale * jax.random.normal(ks[7], (1, C), jnp.float32),
    }


if __name__ == "__main__":
    B, T, C, K = 2, 32, 8, 5            # (batch, time, channels), odd kernel_size
    key = jax.random.PRNGKey(0)
    kx, kp = jax.random.split(key)
    x = jax.random.normal(kx, (B, T, C), jnp.float32)
    params = init_params(kp, C, K)

    ref = jax.block_until_ready(conv_module_ref(x, params))

    # t_tile=16 exercises the multi-tile time grid + halo path at this toy size.
    # f32 MXU path: tight numerical check of the kernel/tiling/BN logic.
    run_f32 = jax.jit(functools.partial(conv_module_pallas, t_tile=16,
                                        matmul_dtype=None))
    out_f32 = jax.block_until_ready(run_f32(x, params))
    np.testing.assert_allclose(np.asarray(out_f32), np.asarray(ref),
                               rtol=1e-3, atol=5e-4)

    # Production default (bf16 MXU inputs, bf16 inter-stage activations):
    # tolerance loosened for bf16 rounding through the batch-norm normalization.
    run_bf16 = jax.jit(functools.partial(conv_module_pallas, t_tile=16))
    out_bf16 = jax.block_until_ready(run_bf16(x, params))
    np.testing.assert_allclose(np.asarray(out_bf16), np.asarray(ref),
                               rtol=1e-1, atol=5e-2)

    print("KERNEL_OK")
</pallas_src>

<mosaic_0001>
module attributes {stable_mosaic.version = 11 : i64} {
  func.func @_stage1_kernel(%arg0: i32, %arg1: i32, %arg2: memref<1x40x128xf32, #tpu.memory_space<vmem>>, %arg3: memref<128x256xf32, #tpu.memory_space<vmem>>, %arg4: memref<1x256xf32, #tpu.memory_space<vmem>>, %arg5: memref<5x128xf32, #tpu.memory_space<vmem>>, %arg6: memref<1x128xf32, #tpu.memory_space<vmem>>, %arg7: memref<1x16x128xf32, #tpu.memory_space<vmem>>, %arg8: memref<1x1x2x128xf32, #tpu.memory_space<vmem>>) attributes {dimension_semantics = [#tpu.dimension_semantics<parallel>, #tpu.dimension_semantics<parallel>], iteration_bounds = array<i64: 2, 2>, scalar_prefetch = 0 : i64, scratch_operands = 0 : i64, tpu.core_type = #tpu.core_type<tc>, window_params = [{pipeline_mode = #tpu.pipeline_mode<synchronous>, transform_indices = @transform_0, window_bounds = array<i64: 1, 40, 128>}, {pipeline_mode = #tpu.pipeline_mode<synchronous>, transform_indices = @transform_1, window_bounds = array<i64: 128, 256>}, {pipeline_mode = #tpu.pipeline_mode<synchronous>, transform_indices = @transform_2, window_bounds = array<i64: 1, 256>}, {pipeline_mode = #tpu.pipeline_mode<synchronous>, transform_indices = @transform_3, window_bounds = array<i64: 5, 128>}, {pipeline_mode = #tpu.pipeline_mode<synchronous>, transform_indices = @transform_4, window_bounds = array<i64: 1, 128>}, {transform_indices = @transform_5, window_bounds = array<i64: 1, 16, 128>}, {transform_indices = @transform_6, window_bounds = array<i64: 1, 1, 2, 128>}]} {
    %c16_i32 = arith.constant 16 : i32
    %0 = arith.muli %arg1, %c16_i32 : i32
    %1 = tpu.assume_multiple %0, 16 : i32
    %c0 = arith.constant 0 : index
    %2 = arith.index_cast %1 : i32 to index
    %c0_0 = arith.constant 0 : index
    %3 = vector.load %arg2[%c0, %2, %c0_0] : memref<1x40x128xf32, #tpu.memory_space<vmem>>, vector<1x24x128xf32>
    %4 = vector.shape_cast %3 : vector<1x24x128xf32> to vector<24x128xf32>
    %c0_1 = arith.constant 0 : index
    %c0_2 = arith.constant 0 : index
    %5 = vector.load %arg3[%c0_1, %c0_2] : memref<128x256xf32, #tpu.memory_space<vmem>>, vector<128x256xf32>
    %cst = arith.constant dense<0.000000e+00> : vector<24x256xf32>
    %6 = tpu.matmul %4, %5, %cst {dimension_numbers = #tpu.dot_dimension_numbers<[1], [0], [0], [1], [0, 0, 1, 1], [], []>} : vector<24x128xf32>, vector<128x256xf32>, vector<24x256xf32> -> vector<24x256xf32>
    %c0_3 = arith.constant 0 : index
    %c0_4 = arith.constant 0 : index
    %7 = vector.load %arg4[%c0_3, %c0_4] : memref<1x256xf32, #tpu.memory_space<vmem>>, vector<1x256xf32>
    %8 = vector.broadcast %7 : vector<1x256xf32> to vector<24x256xf32>
    %9 = arith.addf %6, %8 : vector<24x256xf32>
    %10 = vector.extract_strided_slice %9 {offsets = [0, 0], sizes = [24, 128], strides = [1, 1]} : vector<24x256xf32> to vector<24x128xf32>
    %11 = vector.extract_strided_slice %9 {offsets = [0, 128], sizes = [24, 128], strides = [1, 1]} : vector<24x256xf32> to vector<24x128xf32>
    %12 = arith.negf %11 : vector<24x128xf32>
    %13 = math.exp %12 : vector<24x128xf32>
    %cst_5 = arith.constant 1.000000e+00 : f32
    %14 = vector.broadcast %cst_5 : f32 to vector<24x128xf32>
    %15 = arith.addf %14, %13 : vector<24x128xf32>
    %16 = arith.divf %14, %15 : vector<24x128xf32>
    %17 = arith.mulf %10, %16 : vector<24x128xf32>
    %18 = tpu.iota {dimensions = array<i32: 0>} : vector<24x1xi32>
    %19 = vector.broadcast %1 : i32 to vector<24x1xi32>
    %20 = arith.addi %19, %18 : vector<24x1xi32>
    %c2_i32 = arith.constant 2 : i32
    %21 = vector.broadcast %c2_i32 : i32 to vector<24x1xi32>
    %22 = arith.cmpi sge, %20, %21 : vector<24x1xi32>
    %c34_i32 = arith.constant 34 : i32
    %23 = vector.broadcast %c34_i32 : i32 to vector<24x1xi32>
    %24 = arith.cmpi slt, %20, %23 : vector<24x1xi32>
    %25 = arith.andi %22, %24 : vector<24x1xi1>
    %cst_6 = arith.constant 0.000000e+00 : f32
    %26 = vector.shape_cast %25 : vector<24x1xi1> to vector<24x1xi1>
    %27 = vector.broadcast %26 : vector<24x1xi1> to vector<24x128xi1>
    %28 = vector.broadcast %cst_6 : f32 to vector<24x128xf32>
    %29 = arith.select %27, %17, %28 : vector<24x128xi1>, vector<24x128xf32>
    %c0_7 = arith.constant 0 : index
    %c0_8 = arith.constant 0 : index
    %30 = vector.load %arg5[%c0_7, %c0_8] : memref<5x128xf32, #tpu.memory_space<vmem>>, vector<5x128xf32>
    %31 = vector.extract_strided_slice %29 {offsets = [0, 0], sizes = [16, 128], strides = [1, 1]} : vector<24x128xf32> to vector<16x128xf32>
    %32 = vector.extract_strided_slice %30 {offsets = [0, 0], sizes = [1, 128], strides = [1, 1]} : vector<5x128xf32> to vector<1x128xf32>
    %33 = vector.broadcast %32 : vector<1x128xf32> to vector<16x128xf32>
    %34 = arith.mulf %31, %33 : vector<16x128xf32>
    %35 = vector.extract_strided_slice %29 {offsets = [1, 0], sizes = [16, 128], strides = [1, 1]} : vector<24x128xf32> to vector<16x128xf32>
    %36 = vector.extract_strided_slice %30 {offsets = [1, 0], sizes = [1, 128], strides = [1, 1]} : vector<5x128xf32> to vector<1x128xf32>
    %37 = vector.broadcast %36 : vector<1x128xf32> to vector<16x128xf32>
    %38 = arith.mulf %35, %37 : vector<16x128xf32>
    %39 = arith.addf %34, %38 : vector<16x128xf32>
    %40 = vector.extract_strided_slice %29 {offsets = [2, 0], sizes = [16, 128], strides = [1, 1]} : vector<24x128xf32> to vector<16x128xf32>
    %41 = vector.extract_strided_slice %30 {offsets = [2, 0], sizes = [1, 128], strides = [1, 1]} : vector<5x128xf32> to vector<1x128xf32>
    %42 = vector.broadcast %41 : vector<1x128xf32> to vector<16x128xf32>
    %43 = arith.mulf %40, %42 : vector<16x128xf32>
    %44 = arith.addf %39, %43 : vector<16x128xf32>
    %45 = vector.extract_strided_slice %29 {offsets = [3, 0], sizes = [16, 128], strides = [1, 1]} : vector<24x128xf32> to vector<16x128xf32>
    %46 = vector.extract_strided_slice %30 {offsets = [3, 0], sizes = [1, 128], strides = [1, 1]} : vector<5x128xf32> to vector<1x128xf32>
    %47 = vector.broadcast %46 : vector<1x128xf32> to vector<16x128xf32>
    %48 = arith.mulf %45, %47 : vector<16x128xf32>
    %49 = arith.addf %44, %48 : vector<16x128xf32>
    %50 = vector.extract_strided_slice %29 {offsets = [4, 0], sizes = [16, 128], strides = [1, 1]} : vector<24x128xf32> to vector<16x128xf32>
    %51 = vector.extract_strided_slice %30 {offsets = [4, 0], sizes = [1, 128], strides = [1, 1]} : vector<5x128xf32> to vector<1x128xf32>
    %52 = vector.broadcast %51 : vector<1x128xf32> to vector<16x128xf32>
    %53 = arith.mulf %50, %52 : vector<16x128xf32>
    %54 = arith.addf %49, %53 : vector<16x128xf32>
    %c0_9 = arith.constant 0 : index
    %c0_10 = arith.constant 0 : index
    %55 = vector.load %arg6[%c0_9, %c0_10] : memref<1x128xf32, #tpu.memory_space<vmem>>, vector<1x128xf32>
    %56 = vector.broadcast %55 : vector<1x128xf32> to vector<16x128xf32>
    %57 = arith.addf %54, %56 : vector<16x128xf32>
    %c0_11 = arith.constant 0 : index
    %c0_12 = arith.constant 0 : index
    %c0_13 = arith.constant 0 : index
    %58 = vector.load %arg7[%c0_11, %c0_12, %c0_13] : memref<1x16x128xf32, #tpu.memory_space<vmem>>, vector<1x16x128xf32>
    %59 = vector.shape_cast %58 : vector<1x16x128xf32> to vector<16x128xf32>
    %60 = vector.shape_cast %57 : vector<16x128xf32> to vector<1x16x128xf32>
    tpu.vector_store %arg7[%c0_11, %c0_12, %c0_13], %60 {strides = array<i32>} : memref<1x16x128xf32, #tpu.memory_space<vmem>>, vector<1x16x128xf32>,
    %61 = tpu.iota {dimensions = array<i32: 0>} : vector<16x1xi32>
    %62 = vector.broadcast %1 : i32 to vector<16x1xi32>
    %63 = arith.addi %62, %61 : vector<16x1xi32>
    %c32_i32 = arith.constant 32 : i32
    %64 = vector.broadcast %c32_i32 : i32 to vector<16x1xi32>
    %65 = arith.cmpi slt, %63, %64 : vector<16x1xi32>
    %66 = arith.extui %65 : vector<16x1xi1> to vector<16x1xi32>
    %67 = arith.sitofp %66 : vector<16x1xi32> to vector<16x1xf32>
    %68 = vector.broadcast %67 : vector<16x1xf32> to vector<16x128xf32>
    %69 = arith.mulf %57, %68 : vector<16x128xf32>
    %cst_14 = arith.constant dense<0.000000e+00> : vector<128xf32>
    %70 = vector.multi_reduction <add>, %69, %cst_14 [0] : vector<16x128xf32> to vector<128xf32>
    %71 = vector.shape_cast %70 : vector<128xf32> to vector<1x128xf32>
    %72 = arith.mulf %69, %57 : vector<16x128xf32>
    %cst_15 = arith.constant dense<0.000000e+00> : vector<128xf32>
    %73 = vector.multi_reduction <add>, %72, %cst_15 [0] : vector<16x128xf32> to vector<128xf32>
    %74 = vector.shape_cast %73 : vector<128xf32> to vector<1x128xf32>
    %75 = tpu.concatenate %71, %74 in 0 : vector<1x128xf32>, vector<1x128xf32> -> vector<2x128xf32>
    %c0_16 = arith.constant 0 : index
    %c0_17 = arith.constant 0 : index
    %c0_18 = arith.constant 0 : index
    %c0_19 = arith.constant 0 : index
    %76 = vector.load %arg8[%c0_16, %c0_17, %c0_18, %c0_19] : memref<1x1x2x128xf32, #tpu.memory_space<vmem>>, vector<1x1x2x128xf32>
    %77 = vector.shape_cast %76 : vector<1x1x2x128xf32> to vector<2x128xf32>
    %78 = vector.shape_cast %75 : vector<2x128xf32> to vector<1x1x2x128xf32>
    tpu.vector_store %arg8[%c0_16, %c0_17, %c0_18, %c0_19], %78 {strides = array<i32>} : memref<1x1x2x128xf32, #tpu.memory_space<vmem>>, vector<1x1x2x128xf32>,
    return
  }
  func.func @transform_0(%arg0: i32, %arg1: i32) -> (i32, i32, i32) {
    %c0_i32 = arith.constant 0 : i32
    %c0_i32_0 = arith.constant 0 : i32
    %c0_i32_1 = arith.constant 0 : i32
    return %arg0, %c0_i32, %c0_i32_0 : i32, i32, i32
  }
  func.func @transform_1(%arg0: i32, %arg1: i32) -> (i32, i32) {
    %c0_i32 = arith.constant 0 : i32
    %c0_i32_0 = arith.constant 0 : i32
    %c0_i32_1 = arith.constant 0 : i32
    return %c0_i32, %c0_i32_0 : i32, i32
  }
  func.func @transform_2(%arg0: i32, %arg1: i32) -> (i32, i32) {
    %c0_i32 = arith.constant 0 : i32
    %c0_i32_0 = arith.constant 0 : i32
    %c0_i32_1 = arith.constant 0 : i32
    return %c0_i32, %c0_i32_0 : i32, i32
  }
  func.func @transform_3(%arg0: i32, %arg1: i32) -> (i32, i32) {
    %c0_i32 = arith.constant 0 : i32
    %c0_i32_0 = arith.constant 0 : i32
    %c0_i32_1 = arith.constant 0 : i32
    return %c0_i32, %c0_i32_0 : i32, i32
  }
  func.func @transform_4(%arg0: i32, %arg1: i32) -> (i32, i32) {
    %c0_i32 = arith.constant 0 : i32
    %c0_i32_0 = arith.constant 0 : i32
    %c0_i32_1 = arith.constant 0 : i32
    return %c0_i32, %c0_i32_0 : i32, i32
  }
  func.func @transform_5(%arg0: i32, %arg1: i32) -> (i32, i32, i32) {
    %c0_i32 = arith.constant 0 : i32
    %c0_i32_0 = arith.constant 0 : i32
    return %arg0, %arg1, %c0_i32 : i32, i32, i32
  }
  func.func @transform_6(%arg0: i32, %arg1: i32) -> (i32, i32, i32, i32) {
    %c0_i32 = arith.constant 0 : i32
    %c0_i32_0 = arith.constant 0 : i32
    %c0_i32_1 = arith.constant 0 : i32
    return %arg0, %arg1, %c0_i32, %c0_i32_0 : i32, i32, i32, i32
  }
}

module attributes {stable_mosaic.version = 11 : i64} {
  func.func @_stage2_kernel(%arg0: i32, %arg1: i32, %arg2: memref<1x16x128xf32, #tpu.memory_space<vmem>>, %arg3: memref<1x128xf32, #tpu.memory_space<vmem>>, %arg4: memref<1x128xf32, #tpu.memory_space<vmem>>, %arg5: memref<128x128xf32, #tpu.memory_space<vmem>>, %arg6: memref<1x128xf32, #tpu.memory_space<vmem>>, %arg7: memref<1x16x128xf32, #tpu.memory_space<vmem>>) attributes {dimension_semantics = [#tpu.dimension_semantics<parallel>, #tpu.dimension_semantics<parallel>], iteration_bounds = array<i64: 2, 2>, scalar_prefetch = 0 : i64, scratch_operands = 0 : i64, tpu.core_type = #tpu.core_type<tc>, window_params = [{transform_indices = @transform_0, window_bounds = array<i64: 1, 16, 128>}, {pipeline_mode = #tpu.pipeline_mode<synchronous>, transform_indices = @transform_1, window_bounds = array<i64: 1, 128>}, {pipeline_mode = #tpu.pipeline_mode<synchronous>, transform_indices = @transform_2, window_bounds = array<i64: 1, 128>}, {pipeline_mode = #tpu.pipeline_mode<synchronous>, transform_indices = @transform_3, window_bounds = array<i64: 128, 128>}, {pipeline_mode = #tpu.pipeline_mode<synchronous>, transform_indices = @transform_4, window_bounds = array<i64: 1, 128>}, {transform_indices = @transform_5, window_bounds = array<i64: 1, 16, 128>}]} {
    %c0 = arith.constant 0 : index
    %c0_0 = arith.constant 0 : index
    %c0_1 = arith.constant 0 : index
    %0 = vector.load %arg2[%c0, %c0_0, %c0_1] : memref<1x16x128xf32, #tpu.memory_space<vmem>>, vector<1x16x128xf32>
    %1 = vector.shape_cast %0 : vector<1x16x128xf32> to vector<16x128xf32>
    %c0_2 = arith.constant 0 : index
    %c0_3 = arith.constant 0 : index
    %2 = vector.load %arg3[%c0_2, %c0_3] : memref<1x128xf32, #tpu.memory_space<vmem>>, vector<1x128xf32>
    %3 = vector.broadcast %2 : vector<1x128xf32> to vector<16x128xf32>
    %4 = arith.mulf %1, %3 : vector<16x128xf32>
    %c0_4 = arith.constant 0 : index
    %c0_5 = arith.constant 0 : index
    %5 = vector.load %arg4[%c0_4, %c0_5] : memref<1x128xf32, #tpu.memory_space<vmem>>, vector<1x128xf32>
    %6 = vector.broadcast %5 : vector<1x128xf32> to vector<16x128xf32>
    %7 = arith.addf %4, %6 : vector<16x128xf32>
    %cst = arith.constant 0.000000e+00 : f32
    %8 = vector.broadcast %cst : f32 to vector<16x128xf32>
    %9 = arith.maximumf %7, %8 : vector<16x128xf32>
    %c0_6 = arith.constant 0 : index
    %c0_7 = arith.constant 0 : index
    %10 = vector.load %arg5[%c0_6, %c0_7] : memref<128x128xf32, #tpu.memory_space<vmem>>, vector<128x128xf32>
    %cst_8 = arith.constant dense<0.000000e+00> : vector<16x128xf32>
    %11 = tpu.matmul %9, %10, %cst_8 {dimension_numbers = #tpu.dot_dimension_numbers<[1], [0], [0], [1], [0, 0, 1, 1], [], []>} : vector<16x128xf32>, vector<128x128xf32>, vector<16x128xf32> -> vector<16x128xf32>
    %c0_9 = arith.constant 0 : index
    %c0_10 = arith.constant 0 : index
    %12 = vector.load %arg6[%c0_9, %c0_10] : memref<1x128xf32, #tpu.memory_space<vmem>>, vector<1x128xf32>
    %13 = vector.broadcast %12 : vector<1x128xf32> to vector<16x128xf32>
    %14 = arith.addf %11, %13 : vector<16x128xf32>
    %c0_11 = arith.constant 0 : index
    %c0_12 = arith.constant 0 : index
    %c0_13 = arith.constant 0 : index
    %15 = vector.load %arg7[%c0_11, %c0_12, %c0_13] : memref<1x16x128xf32, #tpu.memory_space<vmem>>, vector<1x16x128xf32>
    %16 = vector.shape_cast %15 : vector<1x16x128xf32> to vector<16x128xf32>
    %17 = vector.shape_cast %14 : vector<16x128xf32> to vector<1x16x128xf32>
    tpu.vector_store %arg7[%c0_11, %c0_12, %c0_13], %17 {strides = array<i32>} : memref<1x16x128xf32, #tpu.memory_space<vmem>>, vector<1x16x128xf32>,
    return
  }
  func.func @transform_0(%arg0: i32, %arg1: i32) -> (i32, i32, i32) {
    %c0_i32 = arith.constant 0 : i32
    %c0_i32_0 = arith.constant 0 : i32
    return %arg0, %arg1, %c0_i32 : i32, i32, i32
  }
  func.func @transform_1(%arg0: i32, %arg1: i32) -> (i32, i32) {
    %c0_i32 = arith.constant 0 : i32
    %c0_i32_0 = arith.constant 0 : i32
    %c0_i32_1 = arith.constant 0 : i32
    return %c0_i32, %c0_i32_0 : i32, i32
  }
  func.func @transform_2(%arg0: i32, %arg1: i32) -> (i32, i32) {
    %c0_i32 = arith.constant 0 : i32
    %c0_i32_0 = arith.constant 0 : i32
    %c0_i32_1 = arith.constant 0 : i32
    return %c0_i32, %c0_i32_0 : i32, i32
  }
  func.func @transform_3(%arg0: i32, %arg1: i32) -> (i32, i32) {
    %c0_i32 = arith.constant 0 : i32
    %c0_i32_0 = arith.constant 0 : i32
    %c0_i32_1 = arith.constant 0 : i32
    return %c0_i32, %c0_i32_0 : i32, i32
  }
  func.func @transform_4(%arg0: i32, %arg1: i32) -> (i32, i32) {
    %c0_i32 = arith.constant 0 : i32
    %c0_i32_0 = arith.constant 0 : i32
    %c0_i32_1 = arith.constant 0 : i32
    return %c0_i32, %c0_i32_0 : i32, i32
  }
  func.func @transform_5(%arg0: i32, %arg1: i32) -> (i32, i32, i32) {
    %c0_i32 = arith.constant 0 : i32
    %c0_i32_0 = arith.constant 0 : i32
    return %arg0, %arg1, %c0_i32 : i32, i32, i32
  }
}

</mosaic_0001>

<llo_original>
// kernel: conv_module_pallas.3
$region0: #{conv_module_pallas.3}
  #allocation0 [shape = 'u32[]', space=smem, size = 0x4, offset = 0x4, fixed_abs, tag = 'smem constant byte address 0x4 - core index']
  #allocation1 [shape = 'u32[144,128]{1,0:T(1,128)}', space=vmem, size = 0x12000, scoped, tag = 'internal scratch']
  %s0 = inlined_call_operand.hbm [shape: f32[2,32,128], index: 0, kind: input, shape index: {}]
  %s1 = inlined_call_operand.hbm [shape: f32[1,128], index: 1, kind: input, shape index: {}]
  %s2 = inlined_call_operand.hbm [shape: f32[1,128], index: 2, kind: input, shape index: {}]
  %s3 = inlined_call_operand.hbm [shape: f32[128,128], index: 3, kind: input, shape index: {}]
  %s4 = inlined_call_operand.hbm [shape: f32[1,128], index: 4, kind: input, shape index: {}]
  %s5 = inlined_call_operand.hbm [shape: f32[2,32,128], index: 5, kind: output, shape index: {}]
  %s6 = sld [smem:[#allocation0]]
  $region73: #{conv_module_pallas.3} parent=0
    _
  %s8 = ssub.s32 1, %s6
  %s9 = scalar_select 0, %s8, %s6
  $region1: #{conv_module_pallas.3} parent=0
    #allocation2 [shape = 'u8[16384]{0}', space=vmem, size = 0x4000, scoped, tag = 'input window, operand 0']
    #allocation3 [shape = 's32[2]{0}', space=sflag, size = 0x8, scoped, tag = 'scoped memory for conv_module_pallas.3']
    #allocation4 [shape = 's32[2]{0}', space=sflag, size = 0x8, scoped, tag = 'scoped memory for conv_module_pallas.3']
    #allocation5 [shape = 'u8[512]{0}', space=vmem, size = 0x400, scoped, tag = 'input window, operand 1, single buffered']
    #allocation6 [shape = 's32[1]{0}', space=sflag, size = 0x4, scoped, tag = 'scoped memory for conv_module_pallas.3']
    #allocation7 [shape = 'u8[512]{0}', space=vmem, size = 0x400, scoped, tag = 'input window, operand 2, single buffered']
    #allocation8 [shape = 'u8[65536]{0}', space=vmem, size = 0x10000, scoped, tag = 'input window, operand 3, single buffered']
    #allocation9 [shape = 's32[1]{0}', space=sflag, size = 0x4, scoped, tag = 'scoped memory for conv_module_pallas.3']
    #allocation10 [shape = 'u8[512]{0}', space=vmem, size = 0x400, scoped, tag = 'input window, operand 4, single buffered']
    #allocation11 [shape = 'u8[16384]{0}', space=vmem, size = 0x4000, scoped, tag = 'output window, operand 0']
    %10 = vsyncpa [#allocation3], 0
    %s11 = scalar_lea.sflag [#allocation3], 1
    %12 = vsyncpa %s11, 0
    %13 = vsyncpa [#allocation6], 0
    %14 = vsyncpa [#allocation9], 0
    %15 = vsyncpa [#allocation4], 0
    %s16 = scalar_lea.sflag [#allocation4], 1
    %17 = vsyncpa %s16, 0
    loop: start=0, step=1, limit=6
    $region2: #{conv_module_pallas.3} parent=1 // loop_pre_header
      _
    $region3: #{conv_module_pallas.3} parent=1 // loop_header
      %s19 = sphi 0, %s23
      %p20 = scmp.ge.s32.totalorder %s19, 6
      %s26 = sphi 0, %s38
      %s27 = sphi 0, %s34
      %s28 = sphi 0, %s26
      %s29 = sphi 0, %s27
      %s30 = sphi 0, %s28
      %s31 = sphi 0, %s29
      %s43 = sphi 0, %s45
      %s46 = sphi 0, %s43
      %s47 = sphi 0, %s46
      %s63 = sphi 0, %s47
      %s67 = sphi 0, %s67
      %s69 = sphi 0, %s67
      %s70 = sphi 0, %s69
      %s84 = sphi 0, %s70
      %s88 = sphi 0, %s88
      %s90 = sphi 0, %s88
      %s91 = sphi 0, %s90
      %s105 = sphi 0, %s91
      %s109 = sphi 0, %s109
      %s111 = sphi 0, %s109
      %s112 = sphi 0, %s111
      %s126 = sphi 0, %s112
      %s130 = sphi 0, %s130
      %s132 = sphi 0, %s130
      %s133 = sphi 0, %s132
      %s147 = sphi 0, %s133
      %s155 = sphi 0, %s157
      %s158 = sphi 0, %s155
      %s159 = sphi 0, %s158
      %s175 = sphi 0, %s159
    $region4: #{conv_module_pallas.3} parent=1 // loop_header_branch
      %22 = sbr.rel (%p20) target = $region8
    $region5: #{conv_module_pallas.3} parent=1 // loop_body
      %s24 = ssub.s32 %s19, 1
      %s25 = ssub.s32 %s19, 2
      %s32 = sadd.s32 1, %s27
      %p33 = scmp.ge.s32.totalorder %s32, 2
      %s34 = scalar_select %p33, 0, %s32
      %s35 = sadd.s32 1, %s26
      %s36 = scalar_select %p33, %s35, %s26
      %p37 = scmp.ge.s32.totalorder %s36, 2
      %s38 = scalar_select %p37, 0, %s36
      %s39 = ssub.s32 %s26, %s38
      %s40 = ssub.s32 %s27, %s34
      %s41 = sor.u32 %s39, %s40
      %p42 = scmp.eq.s32.totalorder %s41, 0
      %s44 = sadd.s32 %s43, 1
      %s45 = scalar_select %p42, %s43, %s44
      %p48 = pneg %p42
      %p49 = scmp.eq.s32.totalorder %s19, 3
      %p50 = por %p48, %p49
      %p51 = scmp.ne.s32.totalorder %s43, %s46
      %p52 = scmp.eq.s32.totalorder %s19, 0
      %p53 = por %p51, %p52
      %p54 = scmp.ne.s32.totalorder %s43, %s46
      %p55 = scmp.eq.s32.totalorder %s24, 3
      %p56 = por %p54, %p55
      %p57 = scmp.ne.s32.totalorder %s46, %s47
      %p58 = scmp.eq.s32.totalorder %s24, 0
      %p59 = por %p57, %p58
      %p60 = scmp.ne.s32.totalorder %s46, %s47
      %p61 = scmp.eq.s32.totalorder %s25, 3
      %p62 = por %p60, %p61
      %p64 = scmp.ne.s32.totalorder %s47, %s63
      %p65 = scmp.eq.s32.totalorder %s25, 0
      %p66 = por %p64, %p65
      %s68 = sadd.s32 %s67, 1
      %p71 = scmp.eq.s32.totalorder %s19, 3
      %p72 = scmp.ne.s32.totalorder %s67, %s69
      %p73 = scmp.eq.s32.totalorder %s19, 0
      %p74 = por %p72, %p73
      %p75 = scmp.ne.s32.totalorder %s67, %s69
      %p76 = scmp.eq.s32.totalorder %s24, 3
      %p77 = por %p75, %p76
      %p78 = scmp.ne.s32.totalorder %s69, %s70
      %p79 = scmp.eq.s32.totalorder %s24, 0
      %p80 = por %p78, %p79
      %p81 = scmp.ne.s32.totalorder %s69, %s70
      %p82 = scmp.eq.s32.totalorder %s25, 3
      %p83 = por %p81, %p82
      %p85 = scmp.ne.s32.totalorder %s70, %s84
      %p86 = scmp.eq.s32.totalorder %s25, 0
      %p87 = por %p85, %p86
      %s89 = sadd.s32 %s88, 1
      %p92 = scmp.eq.s32.totalorder %s19, 3
      %p93 = scmp.ne.s32.totalorder %s88, %s90
      %p94 = scmp.eq.s32.totalorder %s19, 0
      %p95 = por %p93, %p94
      %p96 = scmp.ne.s32.totalorder %s88, %s90
      %p97 = scmp.eq.s32.totalorder %s24, 3
      %p98 = por %p96, %p97
      %p99 = scmp.ne.s32.totalorder %s90, %s91
      %p100 = scmp.eq.s32.totalorder %s24, 0
      %p101 = por %p99, %p100
      %p102 = scmp.ne.s32.totalorder %s90, %s91
      %p103 = scmp.eq.s32.totalorder %s25, 3
      %p104 = por %p102, %p103
      %p106 = scmp.ne.s32.totalorder %s91, %s105
      %p107 = scmp.eq.s32.totalorder %s25, 0
      %p108 = por %p106, %p107
      %s110 = sadd.s32 %s109, 1
      %p113 = scmp.eq.s32.totalorder %s19, 3
      %p114 = scmp.ne.s32.totalorder %s109, %s111
      %p115 = scmp.eq.s32.totalorder %s19, 0
      %p116 = por %p114, %p115
      %p117 = scmp.ne.s32.totalorder %s109, %s111
      %p118 = scmp.eq.s32.totalorder %s24, 3
      %p119 = por %p117, %p118
      %p120 = scmp.ne.s32.totalorder %s111, %s112
      %p121 = scmp.eq.s32.totalorder %s24, 0
      %p122 = por %p120, %p121
      %p123 = scmp.ne.s32.totalorder %s111, %s112
      %p124 = scmp.eq.s32.totalorder %s25, 3
      %p125 = por %p123, %p124
      %p127 = scmp.ne.s32.totalorder %s112, %s126
      %p128 = scmp.eq.s32.totalorder %s25, 0
      %p129 = por %p127, %p128
      %s131 = sadd.s32 %s130, 1
      %p134 = scmp.eq.s32.totalorder %s19, 3
      %p135 = scmp.ne.s32.totalorder %s130, %s132
      %p136 = scmp.eq.s32.totalorder %s19, 0
      %p137 = por %p135, %p136
      %p138 = scmp.ne.s32.totalorder %s130, %s132
      %p139 = scmp.eq.s32.totalorder %s24, 3
      %p140 = por %p138, %p139
      %p141 = scmp.ne.s32.totalorder %s132, %s133
      %p142 = scmp.eq.s32.totalorder %s24, 0
      %p143 = por %p141, %p142
      %p144 = scmp.ne.s32.totalorder %s132, %s133
      %p145 = scmp.eq.s32.totalorder %s25, 3
      %p146 = por %p144, %p145
      %p148 = scmp.ne.s32.totalorder %s133, %s147
      %p149 = scmp.eq.s32.totalorder %s25, 0
      %p150 = por %p148, %p149
      %s151 = ssub.s32 %s26, %s38
      %s152 = ssub.s32 %s27, %s34
      %s153 = sor.u32 %s151, %s152
      %p154 = scmp.eq.s32.totalorder %s153, 0
      %s156 = sadd.s32 %s155, 1
      %s157 = scalar_select %p154, %s155, %s156
      %p160 = pneg %p154
      %p161 = scmp.eq.s32.totalorder %s19, 3
      %p162 = por %p160, %p161
      %p163 = scmp.ne.s32.totalorder %s155, %s158
      %p164 = scmp.eq.s32.totalorder %s19, 0
      %p165 = por %p163, %p164
      %p166 = scmp.ne.s32.totalorder %s155, %s158
      %p167 = scmp.eq.s32.totalorder %s24, 3
      %p168 = por %p166, %p167
      %p169 = scmp.ne.s32.totalorder %s158, %s159
      %p170 = scmp.eq.s32.totalorder %s24, 0
      %p171 = por %p169, %p170
      %p172 = scmp.ne.s32.totalorder %s158, %s159
      %p173 = scmp.eq.s32.totalorder %s25, 3
      %p174 = por %p172, %p173
      %p176 = scmp.ne.s32.totalorder %s159, %s175
      %p177 = scmp.eq.s32.totalorder %s25, 0
      %p178 = por %p176, %p177
      %p179 = scmp.le.s32.totalorder 1, %s19
      %p180 = scmp.lt.s32.totalorder %s19, 5
      %p181 = pnand %p179, %p180
      %p182 = pneg %p181
      // Predicated region
      $region9: #{conv_module_pallas.3} parent=5 // pred_check
        _
      $region10: #{conv_module_pallas.3} parent=5 // pred_check_branch
        %184 = sbr.rel (%p181) target = $region12
      $region11: #{conv_module_pallas.3} parent=5 // pred_region
        %s185 = ssub.s32 %s19, 1
        // Predicated region
        $region13: #{conv_module_pallas.3} parent=11 // pred_check
          %p186 = pneg %p80
        $region14: #{conv_module_pallas.3} parent=11 // pred_check_branch
          %188 = sbr.rel (%p186) target = $region16
        $region15: #{conv_module_pallas.3} parent=11 // pred_region
          %s190 = ssub.s32 16, 16
          %191 = vsyncadd [#allocation6], %s190
          %s193 = sshll.u32 [#allocation5], 4
          %s194 = int_to_ptr.vmem [resolvable:$true] %s193
          %196 = dma.hbm_to_vmem [thread:$0]  %s1, 16, %s194, [#allocation6]
        $region16: #{conv_module_pallas.3} parent=11 // pred_fallthru
          _
        // Predicated region
        $region17: #{conv_module_pallas.3} parent=11 // pred_check
          %p197 = pneg %p101
        $region18: #{conv_module_pallas.3} parent=11 // pred_check_branch
          %199 = sbr.rel (%p197) target = $region20
        $region19: #{conv_module_pallas.3} parent=11 // pred_region
          %s201 = ssub.s32 16, 16
          %202 = vsyncadd [#allocation6], %s201
          %s204 = sshll.u32 [#allocation7], 4
          %s205 = int_to_ptr.vmem [resolvable:$true] %s204
          %207 = dma.hbm_to_vmem [thread:$0]  %s2, 16, %s205, [#allocation6]
        $region20: #{conv_module_pallas.3} parent=11 // pred_fallthru
          _
        // Predicated region
        $region21: #{conv_module_pallas.3} parent=11 // pred_check
          %p208 = pneg %p122
        $region22: #{conv_module_pallas.3} parent=11 // pred_check_branch
          %210 = sbr.rel (%p208) target = $region24
        $region23: #{conv_module_pallas.3} parent=11 // pred_region
          %s212 = ssub.s32 2048, 2048
          %213 = vsyncadd [#allocation9], %s212
          %s214 = sshll.u32 [#allocation8], 4
          %s215 = int_to_ptr.vmem [resolvable:$true] %s214
          %220 = dma.hbm_to_vmem [thread:$0]  %s3, 2048, %s215, [#allocation9], 128, 128, 8
        $region24: #{conv_module_pallas.3} parent=11 // pred_fallthru
          _
        // Predicated region
        $region25: #{conv_module_pallas.3} parent=11 // pred_check
          %p221 = pneg %p143
        $region26: #{conv_module_pallas.3} parent=11 // pred_check_branch
          %223 = sbr.rel (%p221) target = $region28
        $region27: #{conv_module_pallas.3} parent=11 // pred_region
          %s225 = ssub.s32 16, 16
          %226 = vsyncadd [#allocation9], %s225
          %s228 = sshll.u32 [#allocation10], 4
          %s229 = int_to_ptr.vmem [resolvable:$true] %s228
          %231 = dma.hbm_to_vmem [thread:$0]  %s4, 16, %s229, [#allocation9]
        $region28: #{conv_module_pallas.3} parent=11 // pred_fallthru
          _
      $region12: #{conv_module_pallas.3} parent=5 // pred_fallthru
        _
      %p232 = scmp.lt.s32.totalorder %s19, 4
      // Predicated region
      $region29: #{conv_module_pallas.3} parent=5 // pred_check
        %p233 = pneg %p232
      $region30: #{conv_module_pallas.3} parent=5 // pred_check_branch
        %235 = sbr.rel (%p233) target = $region32
      $region31: #{conv_module_pallas.3} parent=5 // pred_region
        // Predicated region
        $region33: #{conv_module_pallas.3} parent=31 // pred_check
          %p236 = pneg %p53
        $region34: #{conv_module_pallas.3} parent=31 // pred_check_branch
          %238 = sbr.rel (%p236) target = $region36
        $region35: #{conv_module_pallas.3} parent=31 // pred_region
          %s239 = sand.u32 %s43, 1
          %s240 = scalar_lea.sflag [#allocation3], %s239
          %s241 = sand.u32 %s43, 1
          %s242 = smul.addr %s241, 16
          %s243 = scalar_lea.vmem [#allocation2], %s242
          %s244 = smul.u32 2, %s27
          %s246 = ssub.s32 256, 256
          %247 = vsyncadd %s240, %s246
          %s248 = smul.addr %s26, 4
          %s249 = sadd.s32 %s244, %s248
          %s250 = smul.addr %s249, 128
          %s251 = scalar_lea.hbm %s0, %s250
          %s252 = sshll.u32 %s243, 4
          %s253 = int_to_ptr.vmem [resolvable:$true] %s252
          %258 = dma.hbm_to_vmem [thread:$0]  %s251, 256, %s253, %s240, 128, 128, 8
        $region36: #{conv_module_pallas.3} parent=31 // pred_fallthru
          _
      $region32: #{conv_module_pallas.3} parent=5 // pred_fallthru
        _
      %p259 = scmp.le.s32.totalorder 1, %s19
      %p260 = scmp.lt.s32.totalorder %s19, 5
      %p261 = pnand %p259, %p260
      %p262 = pneg %p261
      // Predicated region
      $region37: #{conv_module_pallas.3} parent=5 // pred_check
        _
      $region38: #{conv_module_pallas.3} parent=5 // pred_check_branch
        %264 = sbr.rel (%p261) target = $region40
      $region39: #{conv_module_pallas.3} parent=5 // pred_region
        %s265 = ssub.s32 %s19, 1
        %s266 = sand.u32 %s46, 1
        %s267 = scalar_lea.sflag [#allocation3], %s266
        %s268 = sand.u32 %s46, 1
        %s269 = smul.addr %s268, 16
        %s270 = scalar_lea.vmem [#allocation2], %s269
        // Predicated region
        $region41: #{conv_module_pallas.3} parent=39 // pred_check
          %p271 = pneg %p59
        $region42: #{conv_module_pallas.3} parent=39 // pred_check_branch
          %273 = sbr.rel (%p271) target = $region44
        $region43: #{conv_module_pallas.3} parent=39 // pred_region
          %274 = dma.done %s267, 256
        $region44: #{conv_module_pallas.3} parent=39 // pred_fallthru
          _
        // Predicated region
        $region45: #{conv_module_pallas.3} parent=39 // pred_check
          %p275 = pneg %p80
        $region46: #{conv_module_pallas.3} parent=39 // pred_check_branch
          %277 = sbr.rel (%p275) target = $region48
        $region47: #{conv_module_pallas.3} parent=39 // pred_region
          %278 = dma.done [#allocation6], 16
        $region48: #{conv_module_pallas.3} parent=39 // pred_fallthru
          _
        // Predicated region
        $region49: #{conv_module_pallas.3} parent=39 // pred_check
          %p279 = pneg %p101
        $region50: #{conv_module_pallas.3} parent=39 // pred_check_branch
          %281 = sbr.rel (%p279) target = $region52
        $region51: #{conv_module_pallas.3} parent=39 // pred_region
          %282 = dma.done [#allocation6], 16
        $region52: #{conv_module_pallas.3} parent=39 // pred_fallthru
          _
        // Predicated region
        $region53: #{conv_module_pallas.3} parent=39 // pred_check
          %p283 = pneg %p122
        $region54: #{conv_module_pallas.3} parent=39 // pred_check_branch
          %285 = sbr.rel (%p283) target = $region56
        $region55: #{conv_module_pallas.3} parent=39 // pred_region
          %286 = dma.done [#allocation9], 2048
        $region56: #{conv_module_pallas.3} parent=39 // pred_fallthru
          _
        // Predicated region
        $region57: #{conv_module_pallas.3} parent=39 // pred_check
          %p287 = pneg %p143
        $region58: #{conv_module_pallas.3} parent=39 // pred_check_branch
          %289 = sbr.rel (%p287) target = $region60
        $region59: #{conv_module_pallas.3} parent=39 // pred_region
          %290 = dma.done [#allocation9], 16
        $region60: #{conv_module_pallas.3} parent=39 // pred_fallthru
          _
        %s291 = sand.u32 %s46, 1
        %s292 = scalar_lea.sflag [#allocation3], %s291
        %s293 = sand.u32 %s46, 1
        %s294 = smul.addr %s293, 16
        %s295 = scalar_lea.vmem [#allocation2], %s294
        %p296 = pneg %p59
        %p297 = pneg %p56
        %p298 = pneg %p80
        %p299 = pneg %p77
        %p300 = pneg %p101
        %p301 = pneg %p98
        %p302 = pneg %p122
        %p303 = pneg %p119
        %p304 = pneg %p143
        %p305 = pneg %p140
        %p306 = pneg %p171
        %p307 = pneg %p168
        %s308 = sand.u32 %s158, 1
        %s309 = scalar_lea.sflag [#allocation4], %s308
        %s310 = sand.u32 %s158, 1
        %s311 = smul.addr %s310, 16
        %s312 = scalar_lea.vmem [#allocation11], %s311
        %s313 = smul.u32 2, %s29
        %s314 = smul.u32 2, %s29
        %v315 = vld [vmem:[%s270] sm:$0xff]
        %v316 = vld [vmem:[%s270 + $0x8] sm:$0xff]
        %v317 = vld [vmem:[#allocation5] sm:$0x1]
        %v319 = vlaneseq
        %v320 = vshrl.u32 %v319, 7
        %v321 = vsub.s32 0, %v320
        %v322 = vrot.slane %v317, %v321
        %v324 = vmul.f32 %v315, %v322
        %v325 = vmul.f32 %v316, %v322
        %v326 = vld [vmem:[#allocation7] sm:$0x1]
        %v328 = vlaneseq
        %v329 = vshrl.u32 %v328, 7
        %v330 = vsub.s32 0, %v329
        %v331 = vrot.slane %v326, %v330
        %v333 = vadd.f32 %v324, %v331
        %v334 = vadd.f32 %v325, %v331
        %v335 = vmax.f32 %v333, 0.0
        %v336 = vmax.f32 %v334, 0.0
        %v337 = vld [vmem:[#allocation8] sm:$0xff]
        %v338 = vld [vmem:[#allocation8 + $0x8] sm:$0xff]
        %v339 = vld [vmem:[#allocation8 + $0x10] sm:$0xff]
        %v340 = vld [vmem:[#allocation8 + $0x18] sm:$0xff]
        %v341 = vld [vmem:[#allocation8 + $0x20] sm:$0xff]
        %v342 = vld [vmem:[#allocation8 + $0x28] sm:$0xff]
        %v343 = vld [vmem:[#allocation8 + $0x30] sm:$0xff]
        %v344 = vld [vmem:[#allocation8 + $0x38] sm:$0xff]
        %v345 = vld [vmem:[#allocation8 + $0x40] sm:$0xff]
        %v346 = vld [vmem:[#allocation8 + $0x48] sm:$0xff]
        %v347 = vld [vmem:[#allocation8 + $0x50] sm:$0xff]
        %v348 = vld [vmem:[#allocation8 + $0x58] sm:$0xff]
        %v349 = vld [vmem:[#allocation8 + $0x60] sm:$0xff]
        %v350 = vld [vmem:[#allocation8 + $0x68] sm:$0xff]
        %v351 = vld [vmem:[#allocation8 + $0x70] sm:$0xff]
        %v352 = vld [vmem:[#allocation8 + $0x78] sm:$0xff]
        %v353 = vld [vmem:[#allocation10] sm:$0x1]
        %v355 = vlaneseq
        %v356 = vshrl.u32 %v355, 7
        %v357 = vsub.s32 0, %v356
        %v358 = vrot.slane %v353, %v357
        %360 = vmatprep.subr.mxu0 0.0
        %361 = vmatpush1.msra.mxu0 %v337
        %362 = vmatprep.subr.mxu0 0.0
        %363 = vmatpush1.msra.mxu0 %v338
        %364 = vmatprep.subr.mxu0 0.0
        %365 = vmatpush1.msra.mxu0 %v339
        %366 = vmatprep.subr.mxu0 0.0
        %367 = vmatpush1.msra.mxu0 %v340
        %368 = vmatprep.subr.mxu0 0.0
        %369 = vmatpush1.msra.mxu0 %v341
        %370 = vmatprep.subr.mxu0 0.0
        %371 = vmatpush1.msra.mxu0 %v342
        %372 = vmatprep.subr.mxu0 0.0
        %373 = vmatpush1.msra.mxu0 %v343
        %374 = vmatprep.subr.mxu0 0.0
        %375 = vmatpush1.msra.mxu0 %v344
        %376 = vmatprep.subr.mxu0 0.0
        %377 = vmatpush1.msra.mxu0 %v345
        %378 = vmatprep.subr.mxu0 0.0
        %379 = vmatpush1.msra.mxu0 %v346
        %380 = vmatprep.subr.mxu0 0.0
        %381 = vmatpush1.msra.mxu0 %v347
        %382 = vmatprep.subr.mxu0 0.0
        %383 = vmatpush1.msra.mxu0 %v348
        %384 = vmatprep.subr.mxu0 0.0
        %385 = vmatpush1.msra.mxu0 %v349
        %386 = vmatprep.subr.mxu0 0.0
        %387 = vmatpush1.msra.mxu0 %v350
        %388 = vmatprep.subr.mxu0 0.0
        %389 = vmatpush1.msra.mxu0 %v351
        %390 = vmatprep.subr.mxu0 0.0
        %391 = vmatpush1.msra.mxu0 %v352
        %392 = vmatprep.subr.mxu0 0.0
        %393 = vmatpush1.msra.mxu0 0.0
        %394 = vmatprep.subr.mxu0 0.0
        %395 = vmatpush1.msra.mxu0 0.0
        %396 = vmatprep.subr.mxu0 0.0
        %397 = vmatpush1.msra.mxu0 0.0
        %398 = vmatprep.subr.mxu0 0.0
        %399 = vmatpush1.msra.mxu0 0.0
        %400 = vmatprep.subr.mxu0 0.0
        %401 = vmatpush1.msra.mxu0 0.0
        %402 = vmatprep.subr.mxu0 0.0
        %403 = vmatpush1.msra.mxu0 0.0
        %404 = vmatprep.subr.mxu0 0.0
        %405 = vmatpush1.msra.mxu0 0.0
        %406 = vmatprep.subr.mxu0 0.0
        %407 = vmatpush1.msra.mxu0 0.0
        %408 = vmatprep.subr.mxu0 0.0
        %409 = vmatpush1.msra.mxu0 0.0
        %410 = vmatprep.subr.mxu0 0.0
        %411 = vmatpush1.msra.mxu0 0.0
        %412 = vmatprep.subr.mxu0 0.0
        %413 = vmatpush1.msra.mxu0 0.0
        %414 = vmatprep.subr.mxu0 0.0
        %415 = vmatpush1.msra.mxu0 0.0
        %416 = vmatprep.subr.mxu0 0.0
        %417 = vmatpush1.msra.mxu0 0.0
        %418 = vmatprep.subr.mxu0 0.0
        %419 = vmatpush1.msra.mxu0 0.0
        %420 = vmatprep.subr.mxu0 0.0
        %421 = vmatpush1.msra.mxu0 0.0
        %422 = vmatprep.subr.mxu0 0.0
        %423 = vmatpush1.msra.mxu0 0.0
        %424 = vmatprep.mubr.f32.mxu0 0.0
        %425 = vmatmul.mubr.f32.gmra.mrb[0].mxu0 %v335
        %v426 = vpop.f32.mrb[0].mxu0
        %v427 = vadd.f32 %v358, %v426
        %v428 = vpop.f32.mrb[0].mxu0
        %429 = vmatprep.mubr.f32.mxu0 0.0
        %430 = vmatmul.mubr.f32.gmra.mrb[0].mxu0 %v336
        %v431 = vpop.f32.mrb[0].mxu0
        %v432 = vadd.f32 %v358, %v431
        %v433 = vpop.f32.mrb[0].mxu0
        %434 = vdwg.mxu0
        %435 = vst [vmem:[%s312] sm:$0xff] %v427
        %436 = vst [vmem:[%s312 + $0x8] sm:$0xff] %v432
        %s437 = sand.u32 %s158, 1
        %s438 = scalar_lea.sflag [#allocation4], %s437
        %s439 = sand.u32 %s158, 1
        %s440 = smul.addr %s439, 16
        %s441 = scalar_lea.vmem [#allocation11], %s440
        // Predicated region
        $region61: #{conv_module_pallas.3} parent=39 // pred_check
          %p442 = pneg %p168
        $region62: #{conv_module_pallas.3} parent=39 // pred_check_branch
          %444 = sbr.rel (%p442) target = $region64
        $region63: #{conv_module_pallas.3} parent=39 // pred_region
          %s445 = smul.u32 2, %s29
          %s447 = ssub.s32 256, 256
          %448 = vsyncadd %s438, %s447
          %s449 = smul.addr %s28, 4
          %s450 = sadd.s32 %s445, %s449
          %s451 = smul.addr %s450, 128
          %s452 = scalar_lea.hbm %s5, %s451
          %s453 = sshll.u32 %s441, 4
          %s454 = int_to_ptr.vmem [resolvable:$true] %s453
          %459 = dma.vmem_to_hbm [thread:$0]  %s454, 256, %s452, %s438, 128, 128, 8
        $region64: #{conv_module_pallas.3} parent=39 // pred_fallthru
          _
      $region40: #{conv_module_pallas.3} parent=5 // pred_fallthru
        _
      %p460 = scmp.le.s32.totalorder 2, %s19
      // Predicated region
      $region65: #{conv_module_pallas.3} parent=5 // pred_check
        %p461 = pneg %p460
      $region66: #{conv_module_pallas.3} parent=5 // pred_check_branch
        %463 = sbr.rel (%p461) target = $region68
      $region67: #{conv_module_pallas.3} parent=5 // pred_region
        %s464 = ssub.s32 %s19, 2
        // Predicated region
        $region69: #{conv_module_pallas.3} parent=67 // pred_check
          %p465 = pneg %p174
        $region70: #{conv_module_pallas.3} parent=67 // pred_check_branch
          %467 = sbr.rel (%p465) target = $region72
        $region71: #{conv_module_pallas.3} parent=67 // pred_region
          %s468 = sand.u32 %s159, 1
          %s469 = scalar_lea.sflag [#allocation4], %s468
          %s470 = sand.u32 %s159, 1
          %s471 = smul.addr %s470, 16
          %s472 = scalar_lea.vmem [#allocation11], %s471
          %473 = dma.done %s469, 256
        $region72: #{conv_module_pallas.3} parent=67 // pred_fallthru
          _
      $region68: #{conv_module_pallas.3} parent=5 // pred_fallthru
        _
    $region6: #{conv_module_pallas.3} parent=1 // loop_footer
      %s23 = sadd.s32 1, %s19
    $region7: #{conv_module_pallas.3} parent=1 // loop_footer_branch
      %18 = sbr.rel target = $region3
    $region8: #{conv_module_pallas.3} parent=1 // loop_exit
      _
    %474 = vsyncpa [#allocation3], 1
    %s475 = scalar_lea.sflag [#allocation3], 1
    %476 = vsyncpa %s475, 1
    %477 = vsyncpa [#allocation6], 1
    %478 = vsyncpa [#allocation9], 1
    %479 = vsyncpa [#allocation4], 1
    %s480 = scalar_lea.sflag [#allocation4], 1
    %481 = vsyncpa %s480, 1

// kernel: conv_module_pallas.2
$region0: #{conv_module_pallas.2}
  #allocation0 [shape = 'u32[]', space=smem, size = 0x4, offset = 0x4, fixed_abs, tag = 'smem constant byte address 0x4 - core index']
  #allocation1 [shape = 'u32[144,128]{1,0:T(1,128)}', space=vmem, size = 0x12000, scoped, tag = 'internal scratch']
  %s0 = inlined_call_operand.hbm [shape: f32[2,40,128], index: 0, kind: input, shape index: {}]
  %s1 = inlined_call_operand.hbm [shape: f32[128,256], index: 1, kind: input, shape index: {}]
  %s2 = inlined_call_operand.hbm [shape: f32[1,256], index: 2, kind: input, shape index: {}]
  %s3 = inlined_call_operand.hbm [shape: f32[5,128], index: 3, kind: input, shape index: {}]
  %s4 = inlined_call_operand.hbm [shape: f32[1,128], index: 4, kind: input, shape index: {}]
  %s5 = inlined_call_operand.hbm [shape: f32[2,32,128], index: 5, kind: output, shape index: {0}]
  %s6 = inlined_call_operand.hbm [shape: f32[2,2,2,128], index: 6, kind: output, shape index: {1}]
  %7 = xla_tuple %s5, %s6
  %s8 = sld [smem:[#allocation0]]
  $region81: #{conv_module_pallas.2} parent=0
    _
  %s10 = ssub.s32 1, %s8
  %s11 = scalar_select 0, %s10, %s8
  $region1: #{conv_module_pallas.2} parent=0
    #allocation2 [shape = 'u8[20480]{0}', space=vmem, size = 0x5000, scoped, tag = 'input window, operand 0, single buffered']
    #allocation3 [shape = 's32[2]{0}', space=sflag, size = 0x8, scoped, tag = 'scoped memory for conv_module_pallas.2']
    #allocation4 [shape = 's32[2]{0}', space=sflag, size = 0x8, scoped, tag = 'scoped memory for conv_module_pallas.2']
    #allocation5 [shape = 'u8[131072]{0}', space=vmem, size = 0x20000, scoped, tag = 'input window, operand 1, single buffered']
    #allocation6 [shape = 's32[1]{0}', space=sflag, size = 0x4, scoped, tag = 'scoped memory for conv_module_pallas.2']
    #allocation7 [shape = 'u8[1024]{0}', space=vmem, size = 0x400, scoped, tag = 'input window, operand 2, single buffered']
    #allocation8 [shape = 'u8[4096]{0}', space=vmem, size = 0x1000, scoped, tag = 'input window, operand 3, single buffered']
    #allocation9 [shape = 's32[1]{0}', space=sflag, size = 0x4, scoped, tag = 'scoped memory for conv_module_pallas.2']
    #allocation10 [shape = 'u8[512]{0}', space=vmem, size = 0x400, scoped, tag = 'input window, operand 4, single buffered']
    #allocation11 [shape = 'u8[16384]{0}', space=vmem, size = 0x4000, scoped, tag = 'output window, operand 0']
    #allocation12 [shape = 'u8[2048]{0}', space=vmem, size = 0x800, scoped, tag = 'output window, operand 1']
    #allocation13 [shape = 's32[2]{0}', space=sflag, size = 0x8, scoped, tag = 'scoped memory for conv_module_pallas.2']
    %12 = vsyncpa [#allocation3], 0
    %13 = vsyncpa [#allocation6], 0
    %14 = vsyncpa [#allocation9], 0
    %15 = vsyncpa [#allocation4], 0
    %s16 = scalar_lea.sflag [#allocation4], 1
    %17 = vsyncpa %s16, 0
    %18 = vsyncpa [#allocation13], 0
    %s19 = scalar_lea.sflag [#allocation13], 1
    %20 = vsyncpa %s19, 0
    loop: start=0, step=1, limit=6
    $region2: #{conv_module_pallas.2} parent=1 // loop_pre_header
      _
    $region3: #{conv_module_pallas.2} parent=1 // loop_header
      %s22 = sphi 0, %s26
      %p23 = scmp.ge.s32.totalorder %s22, 6
      %s29 = sphi 0, %s41
      %s30 = sphi 0, %s37
      %s31 = sphi 0, %s29
      %s32 = sphi 0, %s30
      %s33 = sphi 0, %s31
      %s34 = sphi 0, %s32
      %s44 = sphi 0, %s46
      %s47 = sphi 0, %s44
      %s48 = sphi 0, %s47
      %s64 = sphi 0, %s48
      %s68 = sphi 0, %s68
      %s70 = sphi 0, %s68
      %s71 = sphi 0, %s70
      %s85 = sphi 0, %s71
      %s89 = sphi 0, %s89
      %s91 = sphi 0, %s89
      %s92 = sphi 0, %s91
      %s106 = sphi 0, %s92
      %s110 = sphi 0, %s110
      %s112 = sphi 0, %s110
      %s113 = sphi 0, %s112
      %s127 = sphi 0, %s113
      %s131 = sphi 0, %s131
      %s133 = sphi 0, %s131
      %s134 = sphi 0, %s133
      %s148 = sphi 0, %s134
      %s156 = sphi 0, %s158
      %s159 = sphi 0, %s156
      %s160 = sphi 0, %s159
      %s176 = sphi 0, %s160
      %s184 = sphi 0, %s186
      %s187 = sphi 0, %s184
      %s188 = sphi 0, %s187
      %s204 = sphi 0, %s188
    $region4: #{conv_module_pallas.2} parent=1 // loop_header_branch
      %25 = sbr.rel (%p23) target = $region8
    $region5: #{conv_module_pallas.2} parent=1 // loop_body
      %s27 = ssub.s32 %s22, 1
      %s28 = ssub.s32 %s22, 2
      %s35 = sadd.s32 1, %s30
      %p36 = scmp.ge.s32.totalorder %s35, 2
      %s37 = scalar_select %p36, 0, %s35
      %s38 = sadd.s32 1, %s29
      %s39 = scalar_select %p36, %s38, %s29
      %p40 = scmp.ge.s32.totalorder %s39, 2
      %s41 = scalar_select %p40, 0, %s39
      %s42 = ssub.s32 %s29, %s41
      %p43 = scmp.eq.s32.totalorder %s42, 0
      %s45 = sadd.s32 %s44, 1
      %s46 = scalar_select %p43, %s44, %s45
      %p49 = pneg %p43
      %p50 = scmp.eq.s32.totalorder %s22, 3
      %p51 = por %p49, %p50
      %p52 = scmp.ne.s32.totalorder %s44, %s47
      %p53 = scmp.eq.s32.totalorder %s22, 0
      %p54 = por %p52, %p53
      %p55 = scmp.ne.s32.totalorder %s44, %s47
      %p56 = scmp.eq.s32.totalorder %s27, 3
      %p57 = por %p55, %p56
      %p58 = scmp.ne.s32.totalorder %s47, %s48
      %p59 = scmp.eq.s32.totalorder %s27, 0
      %p60 = por %p58, %p59
      %p61 = scmp.ne.s32.totalorder %s47, %s48
      %p62 = scmp.eq.s32.totalorder %s28, 3
      %p63 = por %p61, %p62
      %p65 = scmp.ne.s32.totalorder %s48, %s64
      %p66 = scmp.eq.s32.totalorder %s28, 0
      %p67 = por %p65, %p66
      %s69 = sadd.s32 %s68, 1
      %p72 = scmp.eq.s32.totalorder %s22, 3
      %p73 = scmp.ne.s32.totalorder %s68, %s70
      %p74 = scmp.eq.s32.totalorder %s22, 0
      %p75 = por %p73, %p74
      %p76 = scmp.ne.s32.totalorder %s68, %s70
      %p77 = scmp.eq.s32.totalorder %s27, 3
      %p78 = por %p76, %p77
      %p79 = scmp.ne.s32.totalorder %s70, %s71
      %p80 = scmp.eq.s32.totalorder %s27, 0
      %p81 = por %p79, %p80
      %p82 = scmp.ne.s32.totalorder %s70, %s71
      %p83 = scmp.eq.s32.totalorder %s28, 3
      %p84 = por %p82, %p83
      %p86 = scmp.ne.s32.totalorder %s71, %s85
      %p87 = scmp.eq.s32.totalorder %s28, 0
      %p88 = por %p86, %p87
      %s90 = sadd.s32 %s89, 1
      %p93 = scmp.eq.s32.totalorder %s22, 3
      %p94 = scmp.ne.s32.totalorder %s89, %s91
      %p95 = scmp.eq.s32.totalorder %s22, 0
      %p96 = por %p94, %p95
      %p97 = scmp.ne.s32.totalorder %s89, %s91
      %p98 = scmp.eq.s32.totalorder %s27, 3
      %p99 = por %p97, %p98
      %p100 = scmp.ne.s32.totalorder %s91, %s92
      %p101 = scmp.eq.s32.totalorder %s27, 0
      %p102 = por %p100, %p101
      %p103 = scmp.ne.s32.totalorder %s91, %s92
      %p104 = scmp.eq.s32.totalorder %s28, 3
      %p105 = por %p103, %p104
      %p107 = scmp.ne.s32.totalorder %s92, %s106
      %p108 = scmp.eq.s32.totalorder %s28, 0
      %p109 = por %p107, %p108
      %s111 = sadd.s32 %s110, 1
      %p114 = scmp.eq.s32.totalorder %s22, 3
      %p115 = scmp.ne.s32.totalorder %s110, %s112
      %p116 = scmp.eq.s32.totalorder %s22, 0
      %p117 = por %p115, %p116
      %p118 = scmp.ne.s32.totalorder %s110, %s112
      %p119 = scmp.eq.s32.totalorder %s27, 3
      %p120 = por %p118, %p119
      %p121 = scmp.ne.s32.totalorder %s112, %s113
      %p122 = scmp.eq.s32.totalorder %s27, 0
      %p123 = por %p121, %p122
      %p124 = scmp.ne.s32.totalorder %s112, %s113
      %p125 = scmp.eq.s32.totalorder %s28, 3
      %p126 = por %p124, %p125
      %p128 = scmp.ne.s32.totalorder %s113, %s127
      %p129 = scmp.eq.s32.totalorder %s28, 0
      %p130 = por %p128, %p129
      %s132 = sadd.s32 %s131, 1
      %p135 = scmp.eq.s32.totalorder %s22, 3
      %p136 = scmp.ne.s32.totalorder %s131, %s133
      %p137 = scmp.eq.s32.totalorder %s22, 0
      %p138 = por %p136, %p137
      %p139 = scmp.ne.s32.totalorder %s131, %s133
      %p140 = scmp.eq.s32.totalorder %s27, 3
      %p141 = por %p139, %p140
      %p142 = scmp.ne.s32.totalorder %s133, %s134
      %p143 = scmp.eq.s32.totalorder %s27, 0
      %p144 = por %p142, %p143
      %p145 = scmp.ne.s32.totalorder %s133, %s134
      %p146 = scmp.eq.s32.totalorder %s28, 3
      %p147 = por %p145, %p146
      %p149 = scmp.ne.s32.totalorder %s134, %s148
      %p150 = scmp.eq.s32.totalorder %s28, 0
      %p151 = por %p149, %p150
      %s152 = ssub.s32 %s29, %s41
      %s153 = ssub.s32 %s30, %s37
      %s154 = sor.u32 %s152, %s153
      %p155 = scmp.eq.s32.totalorder %s154, 0
      %s157 = sadd.s32 %s156, 1
      %s158 = scalar_select %p155, %s156, %s157
      %p161 = pneg %p155
      %p162 = scmp.eq.s32.totalorder %s22, 3
      %p163 = por %p161, %p162
      %p164 = scmp.ne.s32.totalorder %s156, %s159
      %p165 = scmp.eq.s32.totalorder %s22, 0
      %p166 = por %p164, %p165
      %p167 = scmp.ne.s32.totalorder %s156, %s159
      %p168 = scmp.eq.s32.totalorder %s27, 3
      %p169 = por %p167, %p168
      %p170 = scmp.ne.s32.totalorder %s159, %s160
      %p171 = scmp.eq.s32.totalorder %s27, 0
      %p172 = por %p170, %p171
      %p173 = scmp.ne.s32.totalorder %s159, %s160
      %p174 = scmp.eq.s32.totalorder %s28, 3
      %p175 = por %p173, %p174
      %p177 = scmp.ne.s32.totalorder %s160, %s176
      %p178 = scmp.eq.s32.totalorder %s28, 0
      %p179 = por %p177, %p178
      %s180 = ssub.s32 %s29, %s41
      %s181 = ssub.s32 %s30, %s37
      %s182 = sor.u32 %s180, %s181
      %p183 = scmp.eq.s32.totalorder %s182, 0
      %s185 = sadd.s32 %s184, 1
      %s186 = scalar_select %p183, %s184, %s185
      %p189 = pneg %p183
      %p190 = scmp.eq.s32.totalorder %s22, 3
      %p191 = por %p189, %p190
      %p192 = scmp.ne.s32.totalorder %s184, %s187
      %p193 = scmp.eq.s32.totalorder %s22, 0
      %p194 = por %p192, %p193
      %p195 = scmp.ne.s32.totalorder %s184, %s187
      %p196 = scmp.eq.s32.totalorder %s27, 3
      %p197 = por %p195, %p196
      %p198 = scmp.ne.s32.totalorder %s187, %s188
      %p199 = scmp.eq.s32.totalorder %s27, 0
      %p200 = por %p198, %p199
      %p201 = scmp.ne.s32.totalorder %s187, %s188
      %p202 = scmp.eq.s32.totalorder %s28, 3
      %p203 = por %p201, %p202
      %p205 = scmp.ne.s32.totalorder %s188, %s204
      %p206 = scmp.eq.s32.totalorder %s28, 0
      %p207 = por %p205, %p206
      %p208 = scmp.le.s32.totalorder 1, %s22
      %p209 = scmp.lt.s32.totalorder %s22, 5
      %p210 = pnand %p208, %p209
      %p211 = pneg %p210
      // Predicated region
      $region9: #{conv_module_pallas.2} parent=5 // pred_check
        _
      $region10: #{conv_module_pallas.2} parent=5 // pred_check_branch
        %213 = sbr.rel (%p210) target = $region12
      $region11: #{conv_module_pallas.2} parent=5 // pred_region
        %s214 = ssub.s32 %s22, 1
        // Predicated region
        $region13: #{conv_module_pallas.2} parent=11 // pred_check
          %p215 = pneg %p60
        $region14: #{conv_module_pallas.2} parent=11 // pred_check_branch
          %217 = sbr.rel (%p215) target = $region16
        $region15: #{conv_module_pallas.2} parent=11 // pred_region
          %s219 = ssub.s32 640, 640
          %220 = vsyncadd [#allocation3], %s219
          %s221 = smul.addr %s31, 5
          %s222 = smul.addr %s221, 128
          %s223 = scalar_lea.hbm %s0, %s222
          %s224 = sshll.u32 [#allocation2], 4
          %s225 = int_to_ptr.vmem [resolvable:$true] %s224
          %230 = dma.hbm_to_vmem [thread:$0]  %s223, 640, %s225, [#allocation3], 128, 128, 8
        $region16: #{conv_module_pallas.2} parent=11 // pred_fallthru
          _
        // Predicated region
        $region17: #{conv_module_pallas.2} parent=11 // pred_check
          %p231 = pneg %p81
        $region18: #{conv_module_pallas.2} parent=11 // pred_check_branch
          %233 = sbr.rel (%p231) target = $region20
        $region19: #{conv_module_pallas.2} parent=11 // pred_region
          %s235 = ssub.s32 4096, 4096
          %236 = vsyncadd [#allocation6], %s235
          %s237 = sshll.u32 [#allocation5], 4
          %s238 = int_to_ptr.vmem [resolvable:$true] %s237
          %243 = dma.hbm_to_vmem [thread:$0]  %s1, 4096, %s238, [#allocation6], 256, 256, 16
        $region20: #{conv_module_pallas.2} parent=11 // pred_fallthru
          _
        // Predicated region
        $region21: #{conv_module_pallas.2} parent=11 // pred_check
          %p244 = pneg %p102
        $region22: #{conv_module_pallas.2} parent=11 // pred_check_branch
          %246 = sbr.rel (%p244) target = $region24
        $region23: #{conv_module_pallas.2} parent=11 // pred_region
          %s248 = ssub.s32 32, 32
          %249 = vsyncadd [#allocation6], %s248
          %s251 = sshll.u32 [#allocation7], 4
          %s252 = int_to_ptr.vmem [resolvable:$true] %s251
          %254 = dma.hbm_to_vmem [thread:$0]  %s2, 32, %s252, [#allocation6]
        $region24: #{conv_module_pallas.2} parent=11 // pred_fallthru
          _
        // Predicated region
        $region25: #{conv_module_pallas.2} parent=11 // pred_check
          %p255 = pneg %p123
        $region26: #{conv_module_pallas.2} parent=11 // pred_check_branch
          %257 = sbr.rel (%p255) target = $region28
        $region27: #{conv_module_pallas.2} parent=11 // pred_region
          %s259 = ssub.s32 128, 128
          %260 = vsyncadd [#allocation9], %s259
          %s262 = sshll.u32 [#allocation8], 4
          %s263 = int_to_ptr.vmem [resolvable:$true] %s262
          %265 = dma.hbm_to_vmem [thread:$0]  %s3, 128, %s263, [#allocation9]
        $region28: #{conv_module_pallas.2} parent=11 // pred_fallthru
          _
        // Predicated region
        $region29: #{conv_module_pallas.2} parent=11 // pred_check
          %p266 = pneg %p144
        $region30: #{conv_module_pallas.2} parent=11 // pred_check_branch
          %268 = sbr.rel (%p266) target = $region32
        $region31: #{conv_module_pallas.2} parent=11 // pred_region
          %s270 = ssub.s32 16, 16
          %271 = vsyncadd [#allocation9], %s270
          %s273 = sshll.u32 [#allocation10], 4
          %s274 = int_to_ptr.vmem [resolvable:$true] %s273
          %276 = dma.hbm_to_vmem [thread:$0]  %s4, 16, %s274, [#allocation9]
        $region32: #{conv_module_pallas.2} parent=11 // pred_fallthru
          _
      $region12: #{conv_module_pallas.2} parent=5 // pred_fallthru
        _
      %p277 = scmp.lt.s32.totalorder %s22, 4
      // Predicated region
      $region33: #{conv_module_pallas.2} parent=5 // pred_check
        %p278 = pneg %p277
      $region34: #{conv_module_pallas.2} parent=5 // pred_check_branch
        %280 = sbr.rel (%p278) target = $region36
      $region35: #{conv_module_pallas.2} parent=5 // pred_region
        _
      $region36: #{conv_module_pallas.2} parent=5 // pred_fallthru
        _
      %p281 = scmp.le.s32.totalorder 1, %s22
      %p282 = scmp.lt.s32.totalorder %s22, 5
      %p283 = pnand %p281, %p282
      %p284 = pneg %p283
      // Predicated region
      $region37: #{conv_module_pallas.2} parent=5 // pred_check
        _
      $region38: #{conv_module_pallas.2} parent=5 // pred_check_branch
        %286 = sbr.rel (%p283) target = $region40
      $region39: #{conv_module_pallas.2} parent=5 // pred_region
        %s287 = ssub.s32 %s22, 1
        // Predicated region
        $region41: #{conv_module_pallas.2} parent=39 // pred_check
          %p288 = pneg %p60
        $region42: #{conv_module_pallas.2} parent=39 // pred_check_branch
          %290 = sbr.rel (%p288) target = $region44
        $region43: #{conv_module_pallas.2} parent=39 // pred_region
          %291 = dma.done [#allocation3], 640
        $region44: #{conv_module_pallas.2} parent=39 // pred_fallthru
          _
        // Predicated region
        $region45: #{conv_module_pallas.2} parent=39 // pred_check
          %p292 = pneg %p81
        $region46: #{conv_module_pallas.2} parent=39 // pred_check_branch
          %294 = sbr.rel (%p292) target = $region48
        $region47: #{conv_module_pallas.2} parent=39 // pred_region
          %295 = dma.done [#allocation6], 4096
        $region48: #{conv_module_pallas.2} parent=39 // pred_fallthru
          _
        // Predicated region
        $region49: #{conv_module_pallas.2} parent=39 // pred_check
          %p296 = pneg %p102
        $region50: #{conv_module_pallas.2} parent=39 // pred_check_branch
          %298 = sbr.rel (%p296) target = $region52
        $region51: #{conv_module_pallas.2} parent=39 // pred_region
          %299 = dma.done [#allocation6], 32
        $region52: #{conv_module_pallas.2} parent=39 // pred_fallthru
          _
        // Predicated region
        $region53: #{conv_module_pallas.2} parent=39 // pred_check
          %p300 = pneg %p123
        $region54: #{conv_module_pallas.2} parent=39 // pred_check_branch
          %302 = sbr.rel (%p300) target = $region56
        $region55: #{conv_module_pallas.2} parent=39 // pred_region
          %303 = dma.done [#allocation9], 128
        $region56: #{conv_module_pallas.2} parent=39 // pred_fallthru
          _
        // Predicated region
        $region57: #{conv_module_pallas.2} parent=39 // pred_check
          %p304 = pneg %p144
        $region58: #{conv_module_pallas.2} parent=39 // pred_check_branch
          %306 = sbr.rel (%p304) target = $region60
        $region59: #{conv_module_pallas.2} parent=39 // pred_region
          %307 = dma.done [#allocation9], 16
        $region60: #{conv_module_pallas.2} parent=39 // pred_fallthru
          _
        %p308 = pneg %p60
        %p309 = pneg %p57
        %p310 = pneg %p81
        %p311 = pneg %p78
        %p312 = pneg %p102
        %p313 = pneg %p99
        %p314 = pneg %p123
        %p315 = pneg %p120
        %p316 = pneg %p144
        %p317 = pneg %p141
        %p318 = pneg %p172
        %p319 = pneg %p169
        %s320 = sand.u32 %s159, 1
        %s321 = scalar_lea.sflag [#allocation4], %s320
        %s322 = sand.u32 %s159, 1
        %s323 = smul.addr %s322, 16
        %s324 = scalar_lea.vmem [#allocation11], %s323
        %p325 = pneg %p200
        %p326 = pneg %p197
        %s327 = sand.u32 %s187, 1
        %s328 = scalar_lea.sflag [#allocation13], %s327
        %s329 = sand.u32 %s187, 1
        %s330 = smul.addr %s329, 2
        %s331 = scalar_lea.vmem [#allocation12], %s330
        %s332 = smul.u32 2, %s32
        %s333 = smul.u32 %s32, 16
        %s334 = scalar_lea.vmem [#allocation2], %s333
        %v335 = vld [vmem:[%s334] sm:$0xff]
        %v336 = vld [vmem:[%s334 + $0x8] sm:$0xff]
        %v337 = vld [vmem:[%s334 + $0x10] sm:$0xff]
        %v338 = vld [vmem:[#allocation5] sm:$0xff]
        %v339 = vld [vmem:[#allocation5 + $0x8] sm:$0xff]
        %v340 = vld [vmem:[#allocation5 + $0x10] sm:$0xff]
        %v341 = vld [vmem:[#allocation5 + $0x18] sm:$0xff]
        %v342 = vld [vmem:[#allocation5 + $0x20] sm:$0xff]
        %v343 = vld [vmem:[#allocation5 + $0x28] sm:$0xff]
        %v344 = vld [vmem:[#allocation5 + $0x30] sm:$0xff]
        %v345 = vld [vmem:[#allocation5 + $0x38] sm:$0xff]
        %v346 = vld [vmem:[#allocation5 + $0x40] sm:$0xff]
        %v347 = vld [vmem:[#allocation5 + $0x48] sm:$0xff]
        %v348 = vld [vmem:[#allocation5 + $0x50] sm:$0xff]
        %v349 = vld [vmem:[#allocation5 + $0x58] sm:$0xff]
        %v350 = vld [vmem:[#allocation5 + $0x60] sm:$0xff]
        %v351 = vld [vmem:[#allocation5 + $0x68] sm:$0xff]
        %v352 = vld [vmem:[#allocation5 + $0x70] sm:$0xff]
        %v353 = vld [vmem:[#allocation5 + $0x78] sm:$0xff]
        %v354 = vld [vmem:[#allocation5 + $0x80] sm:$0xff]
        %v355 = vld [vmem:[#allocation5 + $0x88] sm:$0xff]
        %v356 = vld [vmem:[#allocation5 + $0x90] sm:$0xff]
        %v357 = vld [vmem:[#allocation5 + $0x98] sm:$0xff]
        %v358 = vld [vmem:[#allocation5 + $0xa0] sm:$0xff]
        %v359 = vld [vmem:[#allocation5 + $0xa8] sm:$0xff]
        %v360 = vld [vmem:[#allocation5 + $0xb0] sm:$0xff]
        %v361 = vld [vmem:[#allocation5 + $0xb8] sm:$0xff]
        %v362 = vld [vmem:[#allocation5 + $0xc0] sm:$0xff]
        %v363 = vld [vmem:[#allocation5 + $0xc8] sm:$0xff]
        %v364 = vld [vmem:[#allocation5 + $0xd0] sm:$0xff]
        %v365 = vld [vmem:[#allocation5 + $0xd8] sm:$0xff]
        %v366 = vld [vmem:[#allocation5 + $0xe0] sm:$0xff]
        %v367 = vld [vmem:[#allocation5 + $0xe8] sm:$0xff]
        %v368 = vld [vmem:[#allocation5 + $0xf0] sm:$0xff]
        %v369 = vld [vmem:[#allocation5 + $0xf8] sm:$0xff]
        %v370 = vld [vmem:[#allocation7] sm:$0x3]
        %v372 = vlaneseq
        %v373 = vshrl.u32 %v372, 7
        %v374 = vsub.s32 0, %v373
        %v375 = vrot.slane %v370, %v374
        %v376 = vlaneseq
        %v377 = vshrl.u32 %v376, 7
        %v378 = vsub.s32 1, %v377
        %v379 = vrot.slane %v370, %v378
        %382 = vmatprep.subr.mxu0 %v339
        %383 = vmatpush1.msra.mxu0 %v338
        %384 = vmatprep.subr.mxu0 %v341
        %385 = vmatpush1.msra.mxu0 %v340
        %386 = vmatprep.subr.mxu0 %v343
        %387 = vmatpush1.msra.mxu0 %v342
        %388 = vmatprep.subr.mxu0 %v345
        %389 = vmatpush1.msra.mxu0 %v344
        %390 = vmatprep.subr.mxu0 %v347
        %391 = vmatpush1.msra.mxu0 %v346
        %392 = vmatprep.subr.mxu0 %v349
        %393 = vmatpush1.msra.mxu0 %v348
        %394 = vmatprep.subr.mxu0 %v351
        %395 = vmatpush1.msra.mxu0 %v350
        %396 = vmatprep.subr.mxu0 %v353
        %397 = vmatpush1.msra.mxu0 %v352
        %398 = vmatprep.subr.mxu0 %v355
        %399 = vmatpush1.msra.mxu0 %v354
        %400 = vmatprep.subr.mxu0 %v357
        %401 = vmatpush1.msra.mxu0 %v356
        %402 = vmatprep.subr.mxu0 %v359
        %403 = vmatpush1.msra.mxu0 %v358
        %404 = vmatprep.subr.mxu0 %v361
        %405 = vmatpush1.msra.mxu0 %v360
        %406 = vmatprep.subr.mxu0 %v363
        %407 = vmatpush1.msra.mxu0 %v362
        %408 = vmatprep.subr.mxu0 %v365
        %409 = vmatpush1.msra.mxu0 %v364
        %410 = vmatprep.subr.mxu0 %v367
        %411 = vmatpush1.msra.mxu0 %v366
        %412 = vmatprep.subr.mxu0 %v369
        %413 = vmatpush1.msra.mxu0 %v368
        %414 = vmatprep.subr.mxu0 0.0
        %415 = vmatpush1.msra.mxu0 0.0
        %416 = vmatprep.subr.mxu0 0.0
        %417 = vmatpush1.msra.mxu0 0.0
        %418 = vmatprep.subr.mxu0 0.0
        %419 = vmatpush1.msra.mxu0 0.0
        %420 = vmatprep.subr.mxu0 0.0
        %421 = vmatpush1.msra.mxu0 0.0
        %422 = vmatprep.subr.mxu0 0.0
        %423 = vmatpush1.msra.mxu0 0.0
        %424 = vmatprep.subr.mxu0 0.0
        %425 = vmatpush1.msra.mxu0 0.0
        %426 = vmatprep.subr.mxu0 0.0
        %427 = vmatpush1.msra.mxu0 0.0
        %428 = vmatprep.subr.mxu0 0.0
        %429 = vmatpush1.msra.mxu0 0.0
        %430 = vmatprep.subr.mxu0 0.0
        %431 = vmatpush1.msra.mxu0 0.0
        %432 = vmatprep.subr.mxu0 0.0
        %433 = vmatpush1.msra.mxu0 0.0
        %434 = vmatprep.subr.mxu0 0.0
        %435 = vmatpush1.msra.mxu0 0.0
        %436 = vmatprep.subr.mxu0 0.0
        %437 = vmatpush1.msra.mxu0 0.0
        %438 = vmatprep.subr.mxu0 0.0
        %439 = vmatpush1.msra.mxu0 0.0
        %440 = vmatprep.subr.mxu0 0.0
        %441 = vmatpush1.msra.mxu0 0.0
        %442 = vmatprep.subr.mxu0 0.0
        %443 = vmatpush1.msra.mxu0 0.0
        %444 = vmatprep.subr.mxu0 0.0
        %445 = vmatpush1.msra.mxu0 0.0
        %446 = vmatprep.mubr.f32.mxu0 0.0
        %447 = vmatmul.mubr.f32.gmra.mrb[0].mxu0 %v335
        %v448 = vpop.f32.mrb[0].mxu0
        %v449 = vadd.f32 %v375, %v448
        %v450 = vpop.f32.mrb[0].mxu0
        %v451 = vadd.f32 %v379, %v450
        %452 = vmatprep.mubr.f32.mxu0 0.0
        %453 = vmatmul.mubr.f32.gmra.mrb[0].mxu0 %v336
        %v454 = vpop.f32.mrb[0].mxu0
        %v455 = vadd.f32 %v375, %v454
        %v456 = vpop.f32.mrb[0].mxu0
        %v457 = vadd.f32 %v379, %v456
        %458 = vmatprep.mubr.f32.mxu0 0.0
        %459 = vmatmul.mubr.f32.gmra.mrb[0].mxu0 %v337
        %v460 = vpop.f32.mrb[0].mxu0
        %v461 = vadd.f32 %v375, %v460
        %v462 = vpop.f32.mrb[0].mxu0
        %v463 = vadd.f32 %v379, %v462
        %464 = vdwg.mxu0
        %v465 = vxor.u32 %v451, 2147483648
        %v466 = vxor.u32 %v457, 2147483648
        %v467 = vxor.u32 %v463, 2147483648
        %v468 = vmul.f32 %v465, 1.442695
        %v469 = vpow.pop %v468
        %v470 = vmul.f32 %v466, 1.442695
        %v471 = vpow.pop %v470
        %v472 = vmul.f32 %v467, 1.442695
        %v473 = vpow.pop %v472
        %v474 = vadd.f32 %v469, 1.0
        %v475 = vadd.f32 %v471, 1.0
        %v476 = vadd.f32 %v473, 1.0
        %v477 = vrcp.pop %v474
        %v478 = vmul.f32 1.0, %v477
        %v479 = vrcp.pop %v475
        %v480 = vmul.f32 1.0, %v479
        %v481 = vrcp.pop %v476
        %v482 = vmul.f32 1.0, %v481
        %v483 = vmul.f32 %v449, %v478
        %v484 = vmul.f32 %v455, %v480
        %v485 = vmul.f32 %v461, %v482
        %v486 = vlaneseq
        %v487 = vshrl.u32 %v486, 7
        %v488 = vadd.s32 %v487, 8
        %v489 = vadd.s32 %v487, 16
        %v490 = vstv %s333
        %v491 = vadd.s32 %v490, %v487
        %v492 = vadd.s32 %v490, %v488
        %v493 = vadd.s32 %v490, %v489
        %vm494 = vcmp.ge.s32.totalorder %v491, 2
        %vm495 = vcmp.ge.s32.totalorder %v492, 2
        %vm496 = vcmp.ge.s32.totalorder %v493, 2
        %vm497 = vcmp.lt.s32.totalorder %v491, 34
        %vm498 = vcmp.lt.s32.totalorder %v492, 34
        %vm499 = vcmp.lt.s32.totalorder %v493, 34
        %vm500 = vmand %vm494, %vm497
        %vm501 = vmand %vm495, %vm498
        %vm502 = vmand %vm496, %vm499
        %v503 = vsel %vm500, 1, 0
        %v504 = vsel %vm501, 1, 0
        %v505 = vsel %vm502, 1, 0
        %vm506 = vcmp.eq.s32.totalorder %v503, 1
        %vm507 = vcmp.eq.s32.totalorder %v504, 1
        %vm508 = vcmp.eq.s32.totalorder %v505, 1
        %v509 = vsel %vm506, %v483, 0.0
        %v510 = vsel %vm507, %v484, 0.0
        %v511 = vsel %vm508, %v485, 0.0
        %v512 = vld [vmem:[#allocation8] sm:$0x1f]
        %v513 = vlaneseq
        %v514 = vshrl.u32 %v513, 7
        %v515 = vsub.s32 0, %v514
        %v516 = vrot.slane %v512, %v515
        %v517 = vmul.f32 %v509, %v516
        %v518 = vmul.f32 %v510, %v516
        %v519 = vlaneseq
        %v520 = vshrl.u32 %v519, 7
        %v521 = vsub.s32 1, %v520
        %v522 = vrot.slane %v512, %v521
        %v523 = vmul.f32 %v509, %v522
        %v524 = vmul.f32 %v510, %v522
        %v525 = vmul.f32 %v511, %v522
        %vm529 = vcmask 1046528
        %v530 = vrot.slane %v523, 1
        %v531 = vrot.slane %v524, 1
        %v532 = vsel %vm529, %v530, %v531
        %v533 = vrot.slane %v525, 1
        %v534 = vsel %vm529, %v531, %v533
        %v537 = vadd.f32 %v517, %v532
        %v538 = vadd.f32 %v518, %v534
        %v539 = vlaneseq
        %v540 = vshrl.u32 %v539, 7
        %v541 = vsub.s32 2, %v540
        %v542 = vrot.slane %v512, %v541
        %v543 = vmul.f32 %v509, %v542
        %v544 = vmul.f32 %v510, %v542
        %v545 = vmul.f32 %v511, %v542
        %vm549 = vcmask 1045504
        %v550 = vrot.slane %v543, 2
        %v551 = vrot.slane %v544, 2
        %v552 = vsel %vm549, %v550, %v551
        %v553 = vrot.slane %v545, 2
        %v554 = vsel %vm549, %v551, %v553
        %v557 = vadd.f32 %v537, %v552
        %v558 = vadd.f32 %v538, %v554
        %v559 = vlaneseq
        %v560 = vshrl.u32 %v559, 7
        %v561 = vsub.s32 3, %v560
        %v562 = vrot.slane %v512, %v561
        %v563 = vmul.f32 %v509, %v562
        %v564 = vmul.f32 %v510, %v562
        %v565 = vmul.f32 %v511, %v562
        %vm569 = vcmask 1044480
        %v570 = vrot.slane %v563, 3
        %v571 = vrot.slane %v564, 3
        %v572 = vsel %vm569, %v570, %v571
        %v573 = vrot.slane %v565, 3
        %v574 = vsel %vm569, %v571, %v573
        %v577 = vadd.f32 %v557, %v572
        %v578 = vadd.f32 %v558, %v574
        %v579 = vlaneseq
        %v580 = vshrl.u32 %v579, 7
        %v581 = vsub.s32 4, %v580
        %v582 = vrot.slane %v512, %v581
        %v583 = vmul.f32 %v509, %v582
        %v584 = vmul.f32 %v510, %v582
        %v585 = vmul.f32 %v511, %v582
        %vm589 = vcmask 1043456
        %v590 = vrot.slane %v583, 4
        %v591 = vrot.slane %v584, 4
        %v592 = vsel %vm589, %v590, %v591
        %v593 = vrot.slane %v585, 4
        %v594 = vsel %vm589, %v591, %v593
        %v597 = vadd.f32 %v577, %v592
        %v598 = vadd.f32 %v578, %v594
        %v599 = vld [vmem:[#allocation10] sm:$0x1]
        %v601 = vlaneseq
        %v602 = vshrl.u32 %v601, 7
        %v603 = vsub.s32 0, %v602
        %v604 = vrot.slane %v599, %v603
        %v606 = vadd.f32 %v597, %v604
        %v607 = vadd.f32 %v598, %v604
        %608 = vst [vmem:[%s324] sm:$0xff] %v606
        %609 = vst [vmem:[%s324 + $0x8] sm:$0xff] %v607
        %vm610 = vcmp.lt.s32.totalorder %v491, 32
        %vm611 = vcmp.lt.s32.totalorder %v492, 32
        %v612 = vsel %vm610, 1, 0
        %v613 = vsel %vm611, 1, 0
        %v614 = vcvt.s32.f32 %v612
        %v615 = vcvt.s32.f32 %v613
        %v616 = vmul.f32 %v606, %v614
        %v617 = vmul.f32 %v607, %v615
        %v618 = vadd.f32 %v616, %v617
        %v619 = vrot.slane %v618, 4
        %v620 = vadd.f32 %v618, %v619
        %v621 = vrot.slane %v620, 2
        %v622 = vadd.f32 %v620, %v621
        %v623 = vrot.slane %v622, 1
        %v624 = vadd.f32 %v622, %v623
        %v625 = vmul.f32 %v616, %v606
        %v626 = vmul.f32 %v617, %v607
        %v627 = vadd.f32 %v625, %v626
        %v628 = vrot.slane %v627, 4
        %v629 = vadd.f32 %v627, %v628
        %v630 = vrot.slane %v629, 2
        %v631 = vadd.f32 %v629, %v630
        %v632 = vrot.slane %v631, 1
        %v633 = vadd.f32 %v631, %v632
        %vm634 = vcmask 1040384
        %v635 = vsel %vm634, %v624, %v633
        %636 = vst [vmem:[%s331] sm:$0x3] %v635
        %s637 = sand.u32 %s159, 1
        %s638 = scalar_lea.sflag [#allocation4], %s637
        %s639 = sand.u32 %s159, 1
        %s640 = smul.addr %s639, 16
        %s641 = scalar_lea.vmem [#allocation11], %s640
        %s642 = sand.u32 %s187, 1
        %s643 = scalar_lea.sflag [#allocation13], %s642
        %s644 = sand.u32 %s187, 1
        %s645 = smul.addr %s644, 2
        %s646 = scalar_lea.vmem [#allocation12], %s645
        // Predicated region
        $region61: #{conv_module_pallas.2} parent=39 // pred_check
          %p647 = pneg %p169
        $region62: #{conv_module_pallas.2} parent=39 // pred_check_branch
          %649 = sbr.rel (%p647) target = $region64
        $region63: #{conv_module_pallas.2} parent=39 // pred_region
          %s650 = smul.u32 2, %s32
          %s652 = ssub.s32 256, 256
          %653 = vsyncadd %s638, %s652
          %s654 = smul.addr %s31, 4
          %s655 = sadd.s32 %s650, %s654
          %s656 = smul.addr %s655, 128
          %s657 = scalar_lea.hbm %s5, %s656
          %s658 = sshll.u32 %s641, 4
          %s659 = int_to_ptr.vmem [resolvable:$true] %s658
          %664 = dma.vmem_to_hbm [thread:$0]  %s659, 256, %s657, %s638, 128, 128, 8
        $region64: #{conv_module_pallas.2} parent=39 // pred_fallthru
          _
        // Predicated region
        $region65: #{conv_module_pallas.2} parent=39 // pred_check
          %p665 = pneg %p197
        $region66: #{conv_module_pallas.2} parent=39 // pred_check_branch
          %667 = sbr.rel (%p665) target = $region68
        $region67: #{conv_module_pallas.2} parent=39 // pred_region
          %s669 = ssub.s32 32, 32
          %670 = vsyncadd %s643, %s669
          %s671 = smul.addr %s31, 2
          %s672 = sadd.s32 %s32, %s671
          %s673 = smul.addr %s672, 32
          %s674 = scalar_lea.hbm %s6, %s673
          %s676 = sshll.u32 %s646, 4
          %s677 = int_to_ptr.vmem [resolvable:$true] %s676
          %679 = dma.vmem_to_hbm [thread:$0]  %s677, 32, %s674, %s643
        $region68: #{conv_module_pallas.2} parent=39 // pred_fallthru
          _
      $region40: #{conv_module_pallas.2} parent=5 // pred_fallthru
        _
      %p680 = scmp.le.s32.totalorder 2, %s22
      // Predicated region
      $region69: #{conv_module_pallas.2} parent=5 // pred_check
        %p681 = pneg %p680
      $region70: #{conv_module_pallas.2} parent=5 // pred_check_branch
        %683 = sbr.rel (%p681) target = $region72
      $region71: #{conv_module_pallas.2} parent=5 // pred_region
        %s684 = ssub.s32 %s22, 2
        // Predicated region
        $region73: #{conv_module_pallas.2} parent=71 // pred_check
          %p685 = pneg %p175
        $region74: #{conv_module_pallas.2} parent=71 // pred_check_branch
          %687 = sbr.rel (%p685) target = $region76
        $region75: #{conv_module_pallas.2} parent=71 // pred_region
          %s688 = sand.u32 %s160, 1
          %s689 = scalar_lea.sflag [#allocation4], %s688
          %s690 = sand.u32 %s160, 1
          %s691 = smul.addr %s690, 16
          %s692 = scalar_lea.vmem [#allocation11], %s691
          %693 = dma.done %s689, 256
        $region76: #{conv_module_pallas.2} parent=71 // pred_fallthru
          _
        // Predicated region
        $region77: #{conv_module_pallas.2} parent=71 // pred_check
          %p694 = pneg %p203
        $region78: #{conv_module_pallas.2} parent=71 // pred_check_branch
          %696 = sbr.rel (%p694) target = $region80
        $region79: #{conv_module_pallas.2} parent=71 // pred_region
          %s697 = sand.u32 %s188, 1
          %s698 = scalar_lea.sflag [#allocation13], %s697
          %s699 = sand.u32 %s188, 1
          %s700 = smul.addr %s699, 2
          %s701 = scalar_lea.vmem [#allocation12], %s700
          %702 = dma.done %s698, 32
        $region80: #{conv_module_pallas.2} parent=71 // pred_fallthru
          _
      $region72: #{conv_module_pallas.2} parent=5 // pred_fallthru
        _
    $region6: #{conv_module_pallas.2} parent=1 // loop_footer
      %s26 = sadd.s32 1, %s22
    $region7: #{conv_module_pallas.2} parent=1 // loop_footer_branch
      %21 = sbr.rel target = $region3
    $region8: #{conv_module_pallas.2} parent=1 // loop_exit
      _
    %703 = vsyncpa [#allocation3], 1
    %s704 = scalar_lea.sflag [#allocation3], 1
    %705 = vsyncpa %s704, 1
    %706 = vsyncpa [#allocation6], 1
    %707 = vsyncpa [#allocation9], 1
    %708 = vsyncpa [#allocation4], 1
    %s709 = scalar_lea.sflag [#allocation4], 1
    %710 = vsyncpa %s709, 1
    %711 = vsyncpa [#allocation13], 1
    %s712 = scalar_lea.sflag [#allocation13], 1
    %713 = vsyncpa %s712, 1

</llo_original>
